<compile_context>
chip_gen: v6e
topology: v6e:2x2x1
jax: 0.10.0
libtpu: 0.0.40
codegen_flags: <defaults>
</compile_context>

<pallas_src>
import math

import jax
import jax.numpy as jnp
import numpy as np
from jax import lax
from jax.experimental import pallas as pl
from jax.experimental.pallas import tpu as pltpu


def _round_up(x, m):
    return (x + m - 1) // m * m


def _vmem_capacity_bytes():
    """Per-core VMEM capacity; conservative fallback if the query fails."""
    try:
        return int(pltpu.get_tpu_info().vmem_capacity_bytes)
    except Exception:
        return 64 << 20


def _pick_chunk(L, d_model, max_chunk, scratch_budget):
    """Largest L-chunk (multiple of 8, preferably of 128) whose per-chunk
    scratch stays under budget.  Per-row scratch is now only ~3*d_model f32
    (delta / delta*x / y) + one [B|C] row, so even the 128-row lane-density
    floor is a few MiB at d_model=4096 and the budget always wins."""
    lanes = _round_up(d_model, 128)
    per_row = (3 * lanes + 256) * 4
    budget_rows = max(128, scratch_budget // per_row)
    Lc = min(max_chunk, budget_rows, _round_up(L, 8))
    if Lc > 128:
        Lc = (Lc // 128) * 128          # lane-dense transposed output block
    return int(Lc)


def _s6_kernel(x_ref, z_ref, cw_ref, cb_ref, xpw_ref, dtw_ref, dtb_ref,
               At_ref, D_ref, out_ref,
               h_s, tail_s, dlt_s, du_s, bc_s, y_s):
    """One (batch, L-chunk) step of the S6 forward.

    x_ref   : (Lc, d)       x half of the chunk
    z_ref   : (Lc, d)       z half (gate)
    cw_ref  : (d_conv, d)   depthwise conv weight (transposed), f32
    cb_ref  : (1, d)        conv bias, f32
    xpw_ref : (d, Npad)     x_proj weight^T, columns = [B | C | dt | 0-pad], bf16
    dtw_ref : (dt_rank, d)  dt_proj weight^T, f32
    dtb_ref : (1, d)        dt_proj bias, f32
    At_ref  : (n, d)        A^T  (A = -exp(A_log)), f32
    D_ref   : (1, d)        f32
    out_ref : (d, Lc)       transposed output tile
    scratch : h carry (n, d), raw-x tail (d_conv-1, d),
              delta (Lc, d), delta*x_conv (Lc, d), [B|C] (Lc, 2n), y (Lc, d)
    """
    Lc, d = x_ref.shape
    d_conv = cw_ref.shape[0]
    P = d_conv - 1
    n = At_ref.shape[0]
    dt_rank = dtw_ref.shape[0]
    TB = 8                                        # time-block for the scan
    n_tb = Lc // TB

    @pl.when(pl.program_id(1) == 0)
    def _():                                      # new batch element: reset carries
        h_s[...] = jnp.zeros_like(h_s)
        tail_s[...] = jnp.zeros_like(tail_s)

    x = x_ref[...].astype(jnp.float32)

    # ---- causal depthwise conv1d (groups=d) + SiLU.  The tail scratch carries
    # the last d_conv-1 raw-x rows of the previous chunk (zeros for chunk 0,
    # reproducing the conv's left zero-padding).
    x_ext = jnp.concatenate([tail_s[...], x], axis=0)             # (Lc+P, d)
    acc = jnp.broadcast_to(cb_ref[...], (Lc, d))
    for k in range(d_conv):                                       # d_conv is tiny
        xk = x if k == P else x_ext[k:k + Lc, :]
        acc = acc + xk * cw_ref[k:k + 1, :]
    xc = acc * jax.nn.sigmoid(acc)                                # SiLU, (Lc, d) f32
    tail_s[...] = x[Lc - P:, :]                                   # tail for next chunk

    # ---- x_proj on the MXU in bf16 (f32 accumulate); columns = [B | C | dt].
    proj = jnp.dot(xc.astype(jnp.bfloat16), xpw_ref[...],
                   preferred_element_type=jnp.float32)            # (Lc, Npad)
    bc_s[...] = proj[:, :2 * n]                                   # [B | C]

    # ---- dt_proj (unfused): tiny rank-dt_rank contraction + softplus.
    dt0 = 2 * n
    if dt_rank <= 8:                                              # VPU outer products
        dpre = jnp.broadcast_to(dtb_ref[...], (Lc, d))
        for r in range(dt_rank):
            dpre = dpre + proj[:, dt0 + r:dt0 + r + 1] * dtw_ref[r:r + 1, :]
    else:                                                         # small MXU GEMM
        dpre = jnp.dot(proj[:, dt0:dt0 + dt_rank].astype(jnp.bfloat16),
                       dtw_ref[...].astype(jnp.bfloat16),
                       preferred_element_type=jnp.float32) + dtb_ref[...]
    delta = jax.nn.softplus(dpre)                                 # delta_softplus=True
    dlt_s[...] = delta
    du_s[...] = delta * xc

    At = At_ref[...]                                              # (n, d), loop-invariant

    # ---- sequential scan, TB timesteps per iteration.  dA / dB*x / the C
    # lane-broadcast are built per block (never materialized for the whole
    # chunk) and the <h, C> readout is fused into the scan.
    def body(i, h):
        base = pl.multiple_of(i * TB, TB)
        d_blk = dlt_s[pl.ds(base, TB), :]                         # (TB, d)
        u_blk = du_s[pl.ds(base, TB), :]                          # (TB, d)
        bc_blk = bc_s[pl.ds(base, TB), :]                         # (TB, 2n)
        dA = jnp.exp(d_blk[:, None, :] * At[None, :, :])          # (TB, n, d)
        dBx = u_blk[:, None, :] * bc_blk[:, :n, None]             # (TB, n, d)
        Cb = jnp.broadcast_to(bc_blk[:, n:, None], (TB, n, d))    # (TB, n, d)
        for j in range(TB):                                       # static unroll
            h = dA[j] * h + dBx[j]                                # (n, d)
            y_s[pl.ds(base + j, 1), :] = jnp.sum(h * Cb[j], axis=0, keepdims=True)
        return h

    h_s[...] = lax.fori_loop(0, n_tb, body, h_s[...])             # carry h onward

    # ---- D skip + SiLU(z) gate, then write the transposed (d, Lc) tile.
    y = y_s[...] + xc * D_ref[...]
    z = z_ref[...].astype(jnp.float32)
    gated = y * (z * jax.nn.sigmoid(z))
    out_ref[...] = jnp.transpose(gated, (1, 0)).astype(out_ref.dtype)


def s6_forward(modality1, p, *, max_chunk=512, io_dtype=jnp.float32):
    """modality1: (B, L, 2*d_model) -> (B, d_model, L) (module's 'b l d -> b d l')."""
    B, L, two_d = modality1.shape
    d_model = two_d // 2
    d_conv = p["conv_w_t"].shape[0]
    d_state = p["A"].shape[1]
    dt_rank = p["dt_proj_w_t"].shape[0]

    x = modality1[:, :, :d_model].astype(io_dtype)
    z = modality1[:, :, d_model:].astype(io_dtype)

    # x_proj weight^T with columns reordered to [B | C | dt_low], zero-padded to
    # a lane multiple and cast to bf16 for the MXU (accumulation stays f32).
    W = jnp.concatenate([p["x_proj_w_t"][:, dt_rank:],            # B, C
                         p["x_proj_w_t"][:, :dt_rank]], axis=1)   # dt_low
    n_cols = W.shape[1]
    n_pad = _round_up(n_cols, 128)
    W = jnp.pad(W, ((0, 0), (0, n_pad - n_cols))).astype(jnp.bfloat16)
    A_t = jnp.transpose(p["A"], (1, 0)).astype(jnp.float32)       # (n, d)

    # Generation-aware chunking and VMEM budget.
    vmem_cap = _vmem_capacity_bytes()
    Lc = _pick_chunk(L, d_model, max_chunk, scratch_budget=int(vmem_cap * 0.30))
    L_pad = _round_up(L, Lc)
    if L_pad != L:                                                # zero-pad tail; causal
        pad = ((0, 0), (0, L_pad - L), (0, 0))                    # scan -> pad rows only
        x = jnp.pad(x, pad)                                       # affect discarded output
        z = jnp.pad(z, pad)
    num_chunks = L_pad // Lc

    lanes = _round_up(d_model, 128)
    io_b = jnp.dtype(io_dtype).itemsize
    scr = (3 * Lc * lanes + Lc * 256 + (d_state + 16) * lanes) * 4
    live = 3 * Lc * lanes * 4                                     # xc / block temps / transpose
    io = 2 * (2 * Lc * lanes + _round_up(d_model, 8) * _round_up(Lc, 128)) * io_b
    wts = 2 * (d_model * n_pad * 2
               + (d_conv + d_state + dt_rank + 11) * lanes * 4)
    vmem_limit = int(max(16 << 20,
                         min(scr + live + io + wts + (6 << 20),
                             int(vmem_cap * 0.85))))

    param_specs = [
        pl.BlockSpec((d_conv, d_model), lambda b, c: (0, 0)),     # conv weight^T
        pl.BlockSpec((1, d_model), lambda b, c: (0, 0)),          # conv bias
        pl.BlockSpec((d_model, n_pad), lambda b, c: (0, 0)),      # x_proj^T (bf16)
        pl.BlockSpec((dt_rank, d_model), lambda b, c: (0, 0)),    # dt_proj^T
        pl.BlockSpec((1, d_model), lambda b, c: (0, 0)),          # dt_proj bias
        pl.BlockSpec((d_state, d_model), lambda b, c: (0, 0)),    # A^T
        pl.BlockSpec((1, d_model), lambda b, c: (0, 0)),          # D
    ]

    grid_spec = pltpu.PrefetchScalarGridSpec(
        num_scalar_prefetch=0,
        grid=(B, num_chunks),
        in_specs=[
            pl.BlockSpec((None, Lc, d_model), lambda b, c: (b, c, 0)),   # x chunk
            pl.BlockSpec((None, Lc, d_model), lambda b, c: (b, c, 0)),   # z chunk
        ] + param_specs,
        out_specs=pl.BlockSpec((None, d_model, Lc), lambda b, c: (b, 0, c)),
        scratch_shapes=[
            pltpu.VMEM((d_state, d_model), jnp.float32),          # h carry
            pltpu.VMEM((d_conv - 1, d_model), jnp.float32),       # raw-x tail carry
            pltpu.VMEM((Lc, d_model), jnp.float32),               # delta
            pltpu.VMEM((Lc, d_model), jnp.float32),               # delta * x_conv
            pltpu.VMEM((Lc, 2 * d_state), jnp.float32),           # [B | C]
            pltpu.VMEM((Lc, d_model), jnp.float32),               # y
        ],
    )

    out = pl.pallas_call(
        _s6_kernel,
        out_shape=jax.ShapeDtypeStruct((B, d_model, L_pad), io_dtype),
        grid_spec=grid_spec,
        compiler_params=pltpu.CompilerParams(
            dimension_semantics=("parallel", "arbitrary"),
            vmem_limit_bytes=vmem_limit),
    )(x, z, p["conv_w_t"], p["conv_b"], W, p["dt_proj_w_t"], p["dt_proj_b"],
      A_t, p["D"])

    # output is already 'b d l'; drop the L padding if any
    return out[:, :, :L] if L_pad != L else out


def init_params(key, d_model=32, d_state=16, d_conv=4, dt_rank=1,
                dt_min=0.001, dt_max=0.1, dt_scale=1.0, dt_init_floor=1e-4):
    """Deterministic synthetic init matching the shapes in S6.__init__."""
    k1, k2, k3, k4, k5 = jax.random.split(key, 5)
    conv_w = jax.random.normal(k1, (d_model, d_conv), jnp.float32) * 0.1
    conv_b = jax.random.normal(k2, (d_model,), jnp.float32) * 0.1
    x_proj_w = (jax.random.normal(k3, (dt_rank + 2 * d_state, d_model),
                                  jnp.float32) * (d_model ** -0.5))
    dt_init_std = dt_rank ** (-0.5) * dt_scale
    dt_proj_w = jax.random.uniform(k4, (d_model, dt_rank), jnp.float32,
                                   -dt_init_std, dt_init_std)
    dt = jnp.exp(jax.random.uniform(k5, (d_model,), jnp.float32)
                 * (math.log(dt_max) - math.log(dt_min)) + math.log(dt_min))
    dt = jnp.maximum(dt, dt_init_floor)
    inv_dt = dt + jnp.log(-jnp.expm1(-dt))          # dt_proj.bias
    A_log = jnp.log(jnp.broadcast_to(
        jnp.arange(1, d_state + 1, dtype=jnp.float32), (d_model, d_state)))
    A = -jnp.exp(A_log)                             # done in forward in PyTorch
    D = jnp.ones((d_model,), jnp.float32)
    return {
        "conv_w_t": conv_w.T,          # (d_conv, d_model)
        "conv_b": conv_b[None, :],     # (1, d_model)
        "x_proj_w_t": x_proj_w.T,      # (d_model, dt_rank + 2*d_state), cols [dt|B|C]
        "dt_proj_w_t": dt_proj_w.T,    # (dt_rank, d_model)
        "dt_proj_b": inv_dt[None, :],  # (1, d_model)
        "A": A,                        # (d_model, d_state)
        "D": D[None, :],               # (1, d_model)
    }


def s6_reference(modality1, p):
    """Pure-JAX f32 reference of the same math (unfused; for correctness checks)."""
    B, L, two_d = modality1.shape
    d_model = two_d // 2
    d_conv = p["conv_w_t"].shape[0]
    dt_rank = p["dt_proj_w_t"].shape[0]
    d_state = p["A"].shape[1]
    x = modality1[:, :, :d_model]
    z = modality1[:, :, d_model:]
    xpad = jnp.pad(x, ((0, 0), (d_conv - 1, 0), (0, 0)))
    acc = jnp.zeros((B, L, d_model), jnp.float32) + p["conv_b"]
    for k in range(d_conv):
        acc = acc + xpad[:, k:k + L, :] * p["conv_w_t"][k]
    xc = acc * jax.nn.sigmoid(acc)
    xdbl = jnp.einsum("bld,dr->blr", xc, p["x_proj_w_t"])
    dt_low = xdbl[..., :dt_rank]
    Bv = xdbl[..., dt_rank:dt_rank + d_state]
    Cv = xdbl[..., dt_rank + d_state:]
    dpre = jnp.einsum("blr,rd->bld", dt_low, p["dt_proj_w_t"]) + p["dt_proj_b"]
    delta = jax.nn.softplus(dpre)
    dA = jnp.exp(delta[..., None] * p["A"])               # (B,L,d,n)
    dBx = (delta * xc)[..., None] * Bv[:, :, None, :]     # (B,L,d,n)

    def step(h, inp):
        dA_t, dBx_t = inp
        h = dA_t * h + dBx_t
        return h, h

    def per_batch(dA_b, dBx_b):
        h0 = jnp.zeros((d_model, d_state), jnp.float32)
        _, H = lax.scan(step, h0, (dA_b, dBx_b))
        return H

    H = jax.vmap(per_batch)(dA, dBx)                       # (B,L,d,n)
    y = jnp.sum(H * Cv[:, :, None, :], axis=-1) + xc * p["D"]
    out = y * (z * jax.nn.sigmoid(z))
    return jnp.transpose(out, (0, 2, 1))


if __name__ == "__main__":
    d_model, d_state, d_conv, dt_rank = 32, 16, 4, 1
    B, L = 2, 16

    key = jax.random.PRNGKey(0)
    kp, kx = jax.random.split(key)
    params = init_params(kp, d_model, d_state, d_conv, dt_rank)
    modality1 = jax.random.normal(kx, (B, L, 2 * d_model), jnp.float32)

    out = jax.block_until_ready(s6_forward(modality1, params))
    ref = jax.block_until_ready(s6_reference(modality1, params))

    assert out.shape == (B, d_model, L), out.shape
    # bf16 MXU inside the kernel (f32 accumulate/scan) -> relaxed tolerance
    np.testing.assert_allclose(np.asarray(out), np.asarray(ref),
                               rtol=2e-2, atol=2e-2)
    print("KERNEL_OK")
</pallas_src>

<mosaic_0001>
module attributes {stable_mosaic.version = 11 : i64} {
  func.func @_s6_kernel(%arg0: i32, %arg1: i32, %arg2: memref<1x16x32xf32, #tpu.memory_space<vmem>>, %arg3: memref<1x16x32xf32, #tpu.memory_space<vmem>>, %arg4: memref<4x32xf32, #tpu.memory_space<vmem>>, %arg5: memref<1x32xf32, #tpu.memory_space<vmem>>, %arg6: memref<32x128xbf16, #tpu.memory_space<vmem>>, %arg7: memref<1x32xf32, #tpu.memory_space<vmem>>, %arg8: memref<1x32xf32, #tpu.memory_space<vmem>>, %arg9: memref<16x32xf32, #tpu.memory_space<vmem>>, %arg10: memref<1x32xf32, #tpu.memory_space<vmem>>, %arg11: memref<1x32x16xf32, #tpu.memory_space<vmem>>, %arg12: memref<16x32xf32, #tpu.memory_space<vmem>>, %arg13: memref<3x32xf32, #tpu.memory_space<vmem>>, %arg14: memref<16x32xf32, #tpu.memory_space<vmem>>, %arg15: memref<16x32xf32, #tpu.memory_space<vmem>>, %arg16: memref<16x32xf32, #tpu.memory_space<vmem>>, %arg17: memref<16x32xf32, #tpu.memory_space<vmem>>) attributes {dimension_semantics = [#tpu.dimension_semantics<parallel>, #tpu.dimension_semantics<arbitrary>], iteration_bounds = array<i64: 2, 1>, scalar_prefetch = 0 : i64, scratch_operands = 6 : i64, tpu.core_type = #tpu.core_type<tc>, window_params = [{transform_indices = @transform_0, window_bounds = array<i64: 1, 16, 32>}, {transform_indices = @transform_1, window_bounds = array<i64: 1, 16, 32>}, {pipeline_mode = #tpu.pipeline_mode<synchronous>, transform_indices = @transform_2, window_bounds = array<i64: 4, 32>}, {pipeline_mode = #tpu.pipeline_mode<synchronous>, transform_indices = @transform_3, window_bounds = array<i64: 1, 32>}, {pipeline_mode = #tpu.pipeline_mode<synchronous>, transform_indices = @transform_4, window_bounds = array<i64: 32, 128>}, {pipeline_mode = #tpu.pipeline_mode<synchronous>, transform_indices = @transform_5, window_bounds = array<i64: 1, 32>}, {pipeline_mode = #tpu.pipeline_mode<synchronous>, transform_indices = @transform_6, window_bounds = array<i64: 1, 32>}, {pipeline_mode = #tpu.pipeline_mode<synchronous>, transform_indices = @transform_7, window_bounds = array<i64: 16, 32>}, {pipeline_mode = #tpu.pipeline_mode<synchronous>, transform_indices = @transform_8, window_bounds = array<i64: 1, 32>}, {transform_indices = @transform_9, window_bounds = array<i64: 1, 32, 16>}]} {
    %c0_i32 = arith.constant 0 : i32
    %0 = arith.cmpi eq, %arg1, %c0_i32 : i32
    %1 = arith.extui %0 : i1 to i32
    %c0_i32_0 = arith.constant 0 : i32
    %2 = arith.cmpi ne, %1, %c0_i32_0 : i32
    scf.if %2 {
      %cst_48 = arith.constant 0.000000e+00 : f32
      %91 = vector.broadcast %cst_48 : f32 to vector<16x32xf32>
      %c0_49 = arith.constant 0 : index
      %c0_50 = arith.constant 0 : index
      %92 = vector.load %arg12[%c0_49, %c0_50] : memref<16x32xf32, #tpu.memory_space<vmem>>, vector<16x32xf32>
      tpu.vector_store %arg12[%c0_49, %c0_50], %91 {strides = array<i32>} : memref<16x32xf32, #tpu.memory_space<vmem>>, vector<16x32xf32>,
      %cst_51 = arith.constant 0.000000e+00 : f32
      %93 = vector.broadcast %cst_51 : f32 to vector<3x32xf32>
      %c0_52 = arith.constant 0 : index
      %c0_53 = arith.constant 0 : index
      %94 = vector.load %arg13[%c0_52, %c0_53] : memref<3x32xf32, #tpu.memory_space<vmem>>, vector<3x32xf32>
      tpu.vector_store %arg13[%c0_52, %c0_53], %93 {strides = array<i32>} : memref<3x32xf32, #tpu.memory_space<vmem>>, vector<3x32xf32>,
    } else {
    }
    %c0 = arith.constant 0 : index
    %c0_1 = arith.constant 0 : index
    %c0_2 = arith.constant 0 : index
    %3 = vector.load %arg2[%c0, %c0_1, %c0_2] : memref<1x16x32xf32, #tpu.memory_space<vmem>>, vector<1x16x32xf32>
    %4 = vector.shape_cast %3 : vector<1x16x32xf32> to vector<16x32xf32>
    %c0_3 = arith.constant 0 : index
    %c0_4 = arith.constant 0 : index
    %5 = vector.load %arg13[%c0_3, %c0_4] : memref<3x32xf32, #tpu.memory_space<vmem>>, vector<3x32xf32>
    %6 = tpu.concatenate %5, %4 in 0 : vector<3x32xf32>, vector<16x32xf32> -> vector<19x32xf32>
    %c0_5 = arith.constant 0 : index
    %c0_6 = arith.constant 0 : index
    %7 = vector.load %arg5[%c0_5, %c0_6] : memref<1x32xf32, #tpu.memory_space<vmem>>, vector<1x32xf32>
    %8 = vector.shape_cast %7 : vector<1x32xf32> to vector<1x32xf32>
    %9 = vector.broadcast %8 : vector<1x32xf32> to vector<16x32xf32>
    %10 = vector.extract_strided_slice %6 {offsets = [0, 0], sizes = [16, 32], strides = [1, 1]} : vector<19x32xf32> to vector<16x32xf32>
    %c0_7 = arith.constant 0 : index
    %c0_8 = arith.constant 0 : index
    %11 = vector.load %arg4[%c0_7, %c0_8] : memref<4x32xf32, #tpu.memory_space<vmem>>, vector<1x32xf32>
    %12 = vector.broadcast %11 : vector<1x32xf32> to vector<16x32xf32>
    %13 = arith.mulf %10, %12 : vector<16x32xf32>
    %14 = arith.addf %9, %13 : vector<16x32xf32>
    %15 = vector.extract_strided_slice %6 {offsets = [1, 0], sizes = [16, 32], strides = [1, 1]} : vector<19x32xf32> to vector<16x32xf32>
    %c1 = arith.constant 1 : index
    %c0_9 = arith.constant 0 : index
    %16 = vector.load %arg4[%c1, %c0_9] : memref<4x32xf32, #tpu.memory_space<vmem>>, vector<1x32xf32>
    %17 = vector.broadcast %16 : vector<1x32xf32> to vector<16x32xf32>
    %18 = arith.mulf %15, %17 : vector<16x32xf32>
    %19 = arith.addf %14, %18 : vector<16x32xf32>
    %20 = vector.extract_strided_slice %6 {offsets = [2, 0], sizes = [16, 32], strides = [1, 1]} : vector<19x32xf32> to vector<16x32xf32>
    %c2 = arith.constant 2 : index
    %c0_10 = arith.constant 0 : index
    %21 = vector.load %arg4[%c2, %c0_10] : memref<4x32xf32, #tpu.memory_space<vmem>>, vector<1x32xf32>
    %22 = vector.broadcast %21 : vector<1x32xf32> to vector<16x32xf32>
    %23 = arith.mulf %20, %22 : vector<16x32xf32>
    %24 = arith.addf %19, %23 : vector<16x32xf32>
    %c3 = arith.constant 3 : index
    %c0_11 = arith.constant 0 : index
    %25 = vector.load %arg4[%c3, %c0_11] : memref<4x32xf32, #tpu.memory_space<vmem>>, vector<1x32xf32>
    %26 = vector.broadcast %25 : vector<1x32xf32> to vector<16x32xf32>
    %27 = arith.mulf %4, %26 : vector<16x32xf32>
    %28 = arith.addf %24, %27 : vector<16x32xf32>
    %29 = arith.negf %28 : vector<16x32xf32>
    %30 = math.exp %29 : vector<16x32xf32>
    %cst = arith.constant 1.000000e+00 : f32
    %31 = vector.broadcast %cst : f32 to vector<16x32xf32>
    %32 = arith.addf %31, %30 : vector<16x32xf32>
    %33 = arith.divf %31, %32 : vector<16x32xf32>
    %34 = arith.mulf %28, %33 : vector<16x32xf32>
    %35 = vector.extract_strided_slice %4 {offsets = [13, 0], sizes = [3, 32], strides = [1, 1]} : vector<16x32xf32> to vector<3x32xf32>
    %c0_12 = arith.constant 0 : index
    %c0_13 = arith.constant 0 : index
    %36 = vector.load %arg13[%c0_12, %c0_13] : memref<3x32xf32, #tpu.memory_space<vmem>>, vector<3x32xf32>
    tpu.vector_store %arg13[%c0_12, %c0_13], %35 {strides = array<i32>} : memref<3x32xf32, #tpu.memory_space<vmem>>, vector<3x32xf32>,
    %37 = arith.truncf %34 : vector<16x32xf32> to vector<16x32xbf16>
    %c0_14 = arith.constant 0 : index
    %c0_15 = arith.constant 0 : index
    %38 = vector.load %arg6[%c0_14, %c0_15] : memref<32x128xbf16, #tpu.memory_space<vmem>>, vector<32x128xbf16>
    %cst_16 = arith.constant dense<0.000000e+00> : vector<16x128xf32>
    %39 = tpu.matmul %37, %38, %cst_16 {dimension_numbers = #tpu.dot_dimension_numbers<[1], [0], [0], [1], [0, 0, 1, 1], [], []>} : vector<16x32xbf16>, vector<32x128xbf16>, vector<16x128xf32> -> vector<16x128xf32>
    %40 = vector.extract_strided_slice %39 {offsets = [0, 0], sizes = [16, 32], strides = [1, 1]} : vector<16x128xf32> to vector<16x32xf32>
    %c0_17 = arith.constant 0 : index
    %c0_18 = arith.constant 0 : index
    %41 = vector.load %arg16[%c0_17, %c0_18] : memref<16x32xf32, #tpu.memory_space<vmem>>, vector<16x32xf32>
    tpu.vector_store %arg16[%c0_17, %c0_18], %40 {strides = array<i32>} : memref<16x32xf32, #tpu.memory_space<vmem>>, vector<16x32xf32>,
    %c0_19 = arith.constant 0 : index
    %c0_20 = arith.constant 0 : index
    %42 = vector.load %arg8[%c0_19, %c0_20] : memref<1x32xf32, #tpu.memory_space<vmem>>, vector<1x32xf32>
    %43 = vector.shape_cast %42 : vector<1x32xf32> to vector<1x32xf32>
    %44 = vector.broadcast %43 : vector<1x32xf32> to vector<16x32xf32>
    %45 = vector.extract_strided_slice %39 {offsets = [0, 32], sizes = [16, 1], strides = [1, 1]} : vector<16x128xf32> to vector<16x1xf32>
    %c0_21 = arith.constant 0 : index
    %c0_22 = arith.constant 0 : index
    %46 = vector.load %arg7[%c0_21, %c0_22] : memref<1x32xf32, #tpu.memory_space<vmem>>, vector<1x32xf32>
    %47 = vector.broadcast %45 : vector<16x1xf32> to vector<16x32xf32>
    %48 = vector.broadcast %46 : vector<1x32xf32> to vector<16x32xf32>
    %49 = arith.mulf %47, %48 : vector<16x32xf32>
    %50 = arith.addf %44, %49 : vector<16x32xf32>
    %cst_23 = arith.constant 0.000000e+00 : f32
    %51 = vector.broadcast %cst_23 : f32 to vector<16x32xf32>
    %52 = arith.maximumf %50, %51 : vector<16x32xf32>
    %53 = vector.broadcast %cst_23 : f32 to vector<16x32xf32>
    %54 = arith.subf %50, %53 : vector<16x32xf32>
    %55 = arith.cmpf one, %54, %54 : vector<16x32xf32>
    %56 = vector.broadcast %cst_23 : f32 to vector<16x32xf32>
    %57 = arith.addf %50, %56 : vector<16x32xf32>
    %58 = math.absf %54 : vector<16x32xf32>
    %cst_24 = arith.constant 0.000000e+00 : f32
    %59 = vector.broadcast %cst_24 : f32 to vector<16x32xf32>
    %60 = arith.subf %59, %58 : vector<16x32xf32>
    %61 = math.exp %60 : vector<16x32xf32>
    %62 = math.log1p %61 : vector<16x32xf32>
    %63 = arith.addf %52, %62 : vector<16x32xf32>
    %64 = arith.select %55, %57, %63 : vector<16x32xi1>, vector<16x32xf32>
    %c0_25 = arith.constant 0 : index
    %c0_26 = arith.constant 0 : index
    %65 = vector.load %arg14[%c0_25, %c0_26] : memref<16x32xf32, #tpu.memory_space<vmem>>, vector<16x32xf32>
    tpu.vector_store %arg14[%c0_25, %c0_26], %64 {strides = array<i32>} : memref<16x32xf32, #tpu.memory_space<vmem>>, vector<16x32xf32>,
    %66 = arith.mulf %64, %34 : vector<16x32xf32>
    %c0_27 = arith.constant 0 : index
    %c0_28 = arith.constant 0 : index
    %67 = vector.load %arg15[%c0_27, %c0_28] : memref<16x32xf32, #tpu.memory_space<vmem>>, vector<16x32xf32>
    tpu.vector_store %arg15[%c0_27, %c0_28], %66 {strides = array<i32>} : memref<16x32xf32, #tpu.memory_space<vmem>>, vector<16x32xf32>,
    %c0_29 = arith.constant 0 : index
    %c0_30 = arith.constant 0 : index
    %68 = vector.load %arg9[%c0_29, %c0_30] : memref<16x32xf32, #tpu.memory_space<vmem>>, vector<16x32xf32>
    %c0_31 = arith.constant 0 : index
    %c0_32 = arith.constant 0 : index
    %69 = vector.load %arg12[%c0_31, %c0_32] : memref<16x32xf32, #tpu.memory_space<vmem>>, vector<16x32xf32>
    %c0_i32_33 = arith.constant 0 : i32
    %c2_i32 = arith.constant 2 : i32
    %70 = arith.addi %c0_i32_33, %c2_i32 : i32
    %c1_i32 = arith.constant 1 : i32
    %71 = scf.for %arg18 = %c0_i32_33 to %70 step %c1_i32 iter_args(%arg19 = %69) -> (vector<16x32xf32>)  : i32 {
      %c8_i32 = arith.constant 8 : i32
      %91 = arith.muli %arg18, %c8_i32 : i32
      %92 = tpu.assume_multiple %91, 8 : i32
      %93 = arith.index_cast %92 : i32 to index
      %c0_48 = arith.constant 0 : index
      %94 = vector.load %arg14[%93, %c0_48] : memref<16x32xf32, #tpu.memory_space<vmem>>, vector<8x32xf32>
      %95 = arith.index_cast %92 : i32 to index
      %c0_49 = arith.constant 0 : index
      %96 = vector.load %arg15[%95, %c0_49] : memref<16x32xf32, #tpu.memory_space<vmem>>, vector<8x32xf32>
      %97 = arith.index_cast %92 : i32 to index
      %c0_50 = arith.constant 0 : index
      %98 = vector.load %arg16[%97, %c0_50] : memref<16x32xf32, #tpu.memory_space<vmem>>, vector<8x32xf32>
      %99 = vector.shape_cast %94 : vector<8x32xf32> to vector<8x1x32xf32>
      %100 = vector.shape_cast %68 : vector<16x32xf32> to vector<1x16x32xf32>
      %101 = vector.broadcast %99 : vector<8x1x32xf32> to vector<8x16x32xf32>
      %102 = vector.broadcast %100 : vector<1x16x32xf32> to vector<8x16x32xf32>
      %103 = arith.mulf %101, %102 : vector<8x16x32xf32>
      %104 = math.exp %103 : vector<8x16x32xf32>
      %105 = vector.shape_cast %96 : vector<8x32xf32> to vector<8x1x32xf32>
      %106 = vector.extract_strided_slice %98 {offsets = [0, 0], sizes = [8, 16], strides = [1, 1]} : vector<8x32xf32> to vector<8x16xf32>
      %107 = vector.shape_cast %106 : vector<8x16xf32> to vector<8x16x1xf32>
      %108 = vector.broadcast %105 : vector<8x1x32xf32> to vector<8x16x32xf32>
      %109 = vector.broadcast %107 : vector<8x16x1xf32> to vector<8x16x32xf32>
      %110 = arith.mulf %108, %109 : vector<8x16x32xf32>
      %111 = vector.extract_strided_slice %98 {offsets = [0, 16], sizes = [8, 16], strides = [1, 1]} : vector<8x32xf32> to vector<8x16xf32>
      %112 = vector.shape_cast %111 : vector<8x16xf32> to vector<8x16x1xf32>
      %113 = vector.shape_cast %112 : vector<8x16x1xf32> to vector<8x16x1xf32>
      %114 = vector.broadcast %113 : vector<8x16x1xf32> to vector<8x16x32xf32>
      %115 = vector.extract_strided_slice %104 {offsets = [0, 0, 0], sizes = [1, 16, 32], strides = [1, 1, 1]} : vector<8x16x32xf32> to vector<1x16x32xf32>
      %116 = vector.shape_cast %115 : vector<1x16x32xf32> to vector<16x32xf32>
      %117 = arith.mulf %116, %arg19 : vector<16x32xf32>
      %118 = vector.extract_strided_slice %110 {offsets = [0, 0, 0], sizes = [1, 16, 32], strides = [1, 1, 1]} : vector<8x16x32xf32> to vector<1x16x32xf32>
      %119 = vector.shape_cast %118 : vector<1x16x32xf32> to vector<16x32xf32>
      %120 = arith.addf %117, %119 : vector<16x32xf32>
      %121 = vector.extract_strided_slice %114 {offsets = [0, 0, 0], sizes = [1, 16, 32], strides = [1, 1, 1]} : vector<8x16x32xf32> to vector<1x16x32xf32>
      %122 = vector.shape_cast %121 : vector<1x16x32xf32> to vector<16x32xf32>
      %123 = arith.mulf %120, %122 : vector<16x32xf32>
      %cst_51 = arith.constant dense<0.000000e+00> : vector<32xf32>
      %124 = vector.multi_reduction <add>, %123, %cst_51 [0] : vector<16x32xf32> to vector<32xf32>
      %125 = vector.shape_cast %124 : vector<32xf32> to vector<1x32xf32>
      %c0_i32_52 = arith.constant 0 : i32
      %126 = arith.addi %92, %c0_i32_52 : i32
      %127 = arith.index_cast %126 : i32 to index
      %c0_53 = arith.constant 0 : index
      %128 = vector.load %arg17[%127, %c0_53] : memref<16x32xf32, #tpu.memory_space<vmem>>, vector<1x32xf32>
      tpu.vector_store %arg17[%127, %c0_53], %125 {strides = array<i32>} : memref<16x32xf32, #tpu.memory_space<vmem>>, vector<1x32xf32>,
      %129 = vector.extract_strided_slice %104 {offsets = [1, 0, 0], sizes = [1, 16, 32], strides = [1, 1, 1]} : vector<8x16x32xf32> to vector<1x16x32xf32>
      %130 = vector.shape_cast %129 : vector<1x16x32xf32> to vector<16x32xf32>
      %131 = arith.mulf %130, %120 : vector<16x32xf32>
      %132 = vector.extract_strided_slice %110 {offsets = [1, 0, 0], sizes = [1, 16, 32], strides = [1, 1, 1]} : vector<8x16x32xf32> to vector<1x16x32xf32>
      %133 = vector.shape_cast %132 : vector<1x16x32xf32> to vector<16x32xf32>
      %134 = arith.addf %131, %133 : vector<16x32xf32>
      %135 = vector.extract_strided_slice %114 {offsets = [1, 0, 0], sizes = [1, 16, 32], strides = [1, 1, 1]} : vector<8x16x32xf32> to vector<1x16x32xf32>
      %136 = vector.shape_cast %135 : vector<1x16x32xf32> to vector<16x32xf32>
      %137 = arith.mulf %134, %136 : vector<16x32xf32>
      %cst_54 = arith.constant dense<0.000000e+00> : vector<32xf32>
      %138 = vector.multi_reduction <add>, %137, %cst_54 [0] : vector<16x32xf32> to vector<32xf32>
      %139 = vector.shape_cast %138 : vector<32xf32> to vector<1x32xf32>
      %c1_i32_55 = arith.constant 1 : i32
      %140 = arith.addi %92, %c1_i32_55 : i32
      %141 = arith.index_cast %140 : i32 to index
      %c0_56 = arith.constant 0 : index
      %142 = vector.load %arg17[%141, %c0_56] : memref<16x32xf32, #tpu.memory_space<vmem>>, vector<1x32xf32>
      tpu.vector_store %arg17[%141, %c0_56], %139 {strides = array<i32>} : memref<16x32xf32, #tpu.memory_space<vmem>>, vector<1x32xf32>,
      %143 = vector.extract_strided_slice %104 {offsets = [2, 0, 0], sizes = [1, 16, 32], strides = [1, 1, 1]} : vector<8x16x32xf32> to vector<1x16x32xf32>
      %144 = vector.shape_cast %143 : vector<1x16x32xf32> to vector<16x32xf32>
      %145 = arith.mulf %144, %134 : vector<16x32xf32>
      %146 = vector.extract_strided_slice %110 {offsets = [2, 0, 0], sizes = [1, 16, 32], strides = [1, 1, 1]} : vector<8x16x32xf32> to vector<1x16x32xf32>
      %147 = vector.shape_cast %146 : vector<1x16x32xf32> to vector<16x32xf32>
      %148 = arith.addf %145, %147 : vector<16x32xf32>
      %149 = vector.extract_strided_slice %114 {offsets = [2, 0, 0], sizes = [1, 16, 32], strides = [1, 1, 1]} : vector<8x16x32xf32> to vector<1x16x32xf32>
      %150 = vector.shape_cast %149 : vector<1x16x32xf32> to vector<16x32xf32>
      %151 = arith.mulf %148, %150 : vector<16x32xf32>
      %cst_57 = arith.constant dense<0.000000e+00> : vector<32xf32>
      %152 = vector.multi_reduction <add>, %151, %cst_57 [0] : vector<16x32xf32> to vector<32xf32>
      %153 = vector.shape_cast %152 : vector<32xf32> to vector<1x32xf32>
      %c2_i32_58 = arith.constant 2 : i32
      %154 = arith.addi %92, %c2_i32_58 : i32
      %155 = arith.index_cast %154 : i32 to index
      %c0_59 = arith.constant 0 : index
      %156 = vector.load %arg17[%155, %c0_59] : memref<16x32xf32, #tpu.memory_space<vmem>>, vector<1x32xf32>
      tpu.vector_store %arg17[%155, %c0_59], %153 {strides = array<i32>} : memref<16x32xf32, #tpu.memory_space<vmem>>, vector<1x32xf32>,
      %157 = vector.extract_strided_slice %104 {offsets = [3, 0, 0], sizes = [1, 16, 32], strides = [1, 1, 1]} : vector<8x16x32xf32> to vector<1x16x32xf32>
      %158 = vector.shape_cast %157 : vector<1x16x32xf32> to vector<16x32xf32>
      %159 = arith.mulf %158, %148 : vector<16x32xf32>
      %160 = vector.extract_strided_slice %110 {offsets = [3, 0, 0], sizes = [1, 16, 32], strides = [1, 1, 1]} : vector<8x16x32xf32> to vector<1x16x32xf32>
      %161 = vector.shape_cast %160 : vector<1x16x32xf32> to vector<16x32xf32>
      %162 = arith.addf %159, %161 : vector<16x32xf32>
      %163 = vector.extract_strided_slice %114 {offsets = [3, 0, 0], sizes = [1, 16, 32], strides = [1, 1, 1]} : vector<8x16x32xf32> to vector<1x16x32xf32>
      %164 = vector.shape_cast %163 : vector<1x16x32xf32> to vector<16x32xf32>
      %165 = arith.mulf %162, %164 : vector<16x32xf32>
      %cst_60 = arith.constant dense<0.000000e+00> : vector<32xf32>
      %166 = vector.multi_reduction <add>, %165, %cst_60 [0] : vector<16x32xf32> to vector<32xf32>
      %167 = vector.shape_cast %166 : vector<32xf32> to vector<1x32xf32>
      %c3_i32 = arith.constant 3 : i32
      %168 = arith.addi %92, %c3_i32 : i32
      %169 = arith.index_cast %168 : i32 to index
      %c0_61 = arith.constant 0 : index
      %170 = vector.load %arg17[%169, %c0_61] : memref<16x32xf32, #tpu.memory_space<vmem>>, vector<1x32xf32>
      tpu.vector_store %arg17[%169, %c0_61], %167 {strides = array<i32>} : memref<16x32xf32, #tpu.memory_space<vmem>>, vector<1x32xf32>,
      %171 = vector.extract_strided_slice %104 {offsets = [4, 0, 0], sizes = [1, 16, 32], strides = [1, 1, 1]} : vector<8x16x32xf32> to vector<1x16x32xf32>
      %172 = vector.shape_cast %171 : vector<1x16x32xf32> to vector<16x32xf32>
      %173 = arith.mulf %172, %162 : vector<16x32xf32>
      %174 = vector.extract_strided_slice %110 {offsets = [4, 0, 0], sizes = [1, 16, 32], strides = [1, 1, 1]} : vector<8x16x32xf32> to vector<1x16x32xf32>
      %175 = vector.shape_cast %174 : vector<1x16x32xf32> to vector<16x32xf32>
      %176 = arith.addf %173, %175 : vector<16x32xf32>
      %177 = vector.extract_strided_slice %114 {offsets = [4, 0, 0], sizes = [1, 16, 32], strides = [1, 1, 1]} : vector<8x16x32xf32> to vector<1x16x32xf32>
      %178 = vector.shape_cast %177 : vector<1x16x32xf32> to vector<16x32xf32>
      %179 = arith.mulf %176, %178 : vector<16x32xf32>
      %cst_62 = arith.constant dense<0.000000e+00> : vector<32xf32>
      %180 = vector.multi_reduction <add>, %179, %cst_62 [0] : vector<16x32xf32> to vector<32xf32>
      %181 = vector.shape_cast %180 : vector<32xf32> to vector<1x32xf32>
      %c4_i32 = arith.constant 4 : i32
      %182 = arith.addi %92, %c4_i32 : i32
      %183 = arith.index_cast %182 : i32 to index
      %c0_63 = arith.constant 0 : index
      %184 = vector.load %arg17[%183, %c0_63] : memref<16x32xf32, #tpu.memory_space<vmem>>, vector<1x32xf32>
      tpu.vector_store %arg17[%183, %c0_63], %181 {strides = array<i32>} : memref<16x32xf32, #tpu.memory_space<vmem>>, vector<1x32xf32>,
      %185 = vector.extract_strided_slice %104 {offsets = [5, 0, 0], sizes = [1, 16, 32], strides = [1, 1, 1]} : vector<8x16x32xf32> to vector<1x16x32xf32>
      %186 = vector.shape_cast %185 : vector<1x16x32xf32> to vector<16x32xf32>
      %187 = arith.mulf %186, %176 : vector<16x32xf32>
      %188 = vector.extract_strided_slice %110 {offsets = [5, 0, 0], sizes = [1, 16, 32], strides = [1, 1, 1]} : vector<8x16x32xf32> to vector<1x16x32xf32>
      %189 = vector.shape_cast %188 : vector<1x16x32xf32> to vector<16x32xf32>
      %190 = arith.addf %187, %189 : vector<16x32xf32>
      %191 = vector.extract_strided_slice %114 {offsets = [5, 0, 0], sizes = [1, 16, 32], strides = [1, 1, 1]} : vector<8x16x32xf32> to vector<1x16x32xf32>
      %192 = vector.shape_cast %191 : vector<1x16x32xf32> to vector<16x32xf32>
      %193 = arith.mulf %190, %192 : vector<16x32xf32>
      %cst_64 = arith.constant dense<0.000000e+00> : vector<32xf32>
      %194 = vector.multi_reduction <add>, %193, %cst_64 [0] : vector<16x32xf32> to vector<32xf32>
      %195 = vector.shape_cast %194 : vector<32xf32> to vector<1x32xf32>
      %c5_i32 = arith.constant 5 : i32
      %196 = arith.addi %92, %c5_i32 : i32
      %197 = arith.index_cast %196 : i32 to index
      %c0_65 = arith.constant 0 : index
      %198 = vector.load %arg17[%197, %c0_65] : memref<16x32xf32, #tpu.memory_space<vmem>>, vector<1x32xf32>
      tpu.vector_store %arg17[%197, %c0_65], %195 {strides = array<i32>} : memref<16x32xf32, #tpu.memory_space<vmem>>, vector<1x32xf32>,
      %199 = vector.extract_strided_slice %104 {offsets = [6, 0, 0], sizes = [1, 16, 32], strides = [1, 1, 1]} : vector<8x16x32xf32> to vector<1x16x32xf32>
      %200 = vector.shape_cast %199 : vector<1x16x32xf32> to vector<16x32xf32>
      %201 = arith.mulf %200, %190 : vector<16x32xf32>
      %202 = vector.extract_strided_slice %110 {offsets = [6, 0, 0], sizes = [1, 16, 32], strides = [1, 1, 1]} : vector<8x16x32xf32> to vector<1x16x32xf32>
      %203 = vector.shape_cast %202 : vector<1x16x32xf32> to vector<16x32xf32>
      %204 = arith.addf %201, %203 : vector<16x32xf32>
      %205 = vector.extract_strided_slice %114 {offsets = [6, 0, 0], sizes = [1, 16, 32], strides = [1, 1, 1]} : vector<8x16x32xf32> to vector<1x16x32xf32>
      %206 = vector.shape_cast %205 : vector<1x16x32xf32> to vector<16x32xf32>
      %207 = arith.mulf %204, %206 : vector<16x32xf32>
      %cst_66 = arith.constant dense<0.000000e+00> : vector<32xf32>
      %208 = vector.multi_reduction <add>, %207, %cst_66 [0] : vector<16x32xf32> to vector<32xf32>
      %209 = vector.shape_cast %208 : vector<32xf32> to vector<1x32xf32>
      %c6_i32 = arith.constant 6 : i32
      %210 = arith.addi %92, %c6_i32 : i32
      %211 = arith.index_cast %210 : i32 to index
      %c0_67 = arith.constant 0 : index
      %212 = vector.load %arg17[%211, %c0_67] : memref<16x32xf32, #tpu.memory_space<vmem>>, vector<1x32xf32>
      tpu.vector_store %arg17[%211, %c0_67], %209 {strides = array<i32>} : memref<16x32xf32, #tpu.memory_space<vmem>>, vector<1x32xf32>,
      %213 = vector.extract_strided_slice %104 {offsets = [7, 0, 0], sizes = [1, 16, 32], strides = [1, 1, 1]} : vector<8x16x32xf32> to vector<1x16x32xf32>
      %214 = vector.shape_cast %213 : vector<1x16x32xf32> to vector<16x32xf32>
      %215 = arith.mulf %214, %204 : vector<16x32xf32>
      %216 = vector.extract_strided_slice %110 {offsets = [7, 0, 0], sizes = [1, 16, 32], strides = [1, 1, 1]} : vector<8x16x32xf32> to vector<1x16x32xf32>
      %217 = vector.shape_cast %216 : vector<1x16x32xf32> to vector<16x32xf32>
      %218 = arith.addf %215, %217 : vector<16x32xf32>
      %219 = vector.extract_strided_slice %114 {offsets = [7, 0, 0], sizes = [1, 16, 32], strides = [1, 1, 1]} : vector<8x16x32xf32> to vector<1x16x32xf32>
      %220 = vector.shape_cast %219 : vector<1x16x32xf32> to vector<16x32xf32>
      %221 = arith.mulf %218, %220 : vector<16x32xf32>
      %cst_68 = arith.constant dense<0.000000e+00> : vector<32xf32>
      %222 = vector.multi_reduction <add>, %221, %cst_68 [0] : vector<16x32xf32> to vector<32xf32>
      %223 = vector.shape_cast %222 : vector<32xf32> to vector<1x32xf32>
      %c7_i32 = arith.constant 7 : i32
      %224 = arith.addi %92, %c7_i32 : i32
      %225 = arith.index_cast %224 : i32 to index
      %c0_69 = arith.constant 0 : index
      %226 = vector.load %arg17[%225, %c0_69] : memref<16x32xf32, #tpu.memory_space<vmem>>, vector<1x32xf32>
      tpu.vector_store %arg17[%225, %c0_69], %223 {strides = array<i32>} : memref<16x32xf32, #tpu.memory_space<vmem>>, vector<1x32xf32>,
      scf.yield %218 : vector<16x32xf32>
    }
    %c2_i32_34 = arith.constant 2 : i32
    %c0_35 = arith.constant 0 : index
    %c0_36 = arith.constant 0 : index
    %72 = vector.load %arg12[%c0_35, %c0_36] : memref<16x32xf32, #tpu.memory_space<vmem>>, vector<16x32xf32>
    tpu.vector_store %arg12[%c0_35, %c0_36], %71 {strides = array<i32>} : memref<16x32xf32, #tpu.memory_space<vmem>>, vector<16x32xf32>,
    %c0_37 = arith.constant 0 : index
    %c0_38 = arith.constant 0 : index
    %73 = vector.load %arg17[%c0_37, %c0_38] : memref<16x32xf32, #tpu.memory_space<vmem>>, vector<16x32xf32>
    %c0_39 = arith.constant 0 : index
    %c0_40 = arith.constant 0 : index
    %74 = vector.load %arg10[%c0_39, %c0_40] : memref<1x32xf32, #tpu.memory_space<vmem>>, vector<1x32xf32>
    %75 = vector.broadcast %74 : vector<1x32xf32> to vector<16x32xf32>
    %76 = arith.mulf %34, %75 : vector<16x32xf32>
    %77 = arith.addf %73, %76 : vector<16x32xf32>
    %c0_41 = arith.constant 0 : index
    %c0_42 = arith.constant 0 : index
    %c0_43 = arith.constant 0 : index
    %78 = vector.load %arg3[%c0_41, %c0_42, %c0_43] : memref<1x16x32xf32, #tpu.memory_space<vmem>>, vector<1x16x32xf32>
    %79 = vector.shape_cast %78 : vector<1x16x32xf32> to vector<16x32xf32>
    %80 = arith.negf %79 : vector<16x32xf32>
    %81 = math.exp %80 : vector<16x32xf32>
    %cst_44 = arith.constant 1.000000e+00 : f32
    %82 = vector.broadcast %cst_44 : f32 to vector<16x32xf32>
    %83 = arith.addf %82, %81 : vector<16x32xf32>
    %84 = arith.divf %82, %83 : vector<16x32xf32>
    %85 = arith.mulf %79, %84 : vector<16x32xf32>
    %86 = arith.mulf %77, %85 : vector<16x32xf32>
    %87 = tpu.transpose %86, [1, 0] : vector<16x32xf32> -> vector<32x16xf32>
    %c0_45 = arith.constant 0 : index
    %c0_46 = arith.constant 0 : index
    %c0_47 = arith.constant 0 : index
    %88 = vector.load %arg11[%c0_45, %c0_46, %c0_47] : memref<1x32x16xf32, #tpu.memory_space<vmem>>, vector<1x32x16xf32>
    %89 = vector.shape_cast %88 : vector<1x32x16xf32> to vector<32x16xf32>
    %90 = vector.shape_cast %87 : vector<32x16xf32> to vector<1x32x16xf32>
    tpu.vector_store %arg11[%c0_45, %c0_46, %c0_47], %90 {strides = array<i32>} : memref<1x32x16xf32, #tpu.memory_space<vmem>>, vector<1x32x16xf32>,
    return
  }
  func.func @transform_0(%arg0: i32, %arg1: i32) -> (i32, i32, i32) {
    %c0_i32 = arith.constant 0 : i32
    %c0_i32_0 = arith.constant 0 : i32
    return %arg0, %arg1, %c0_i32 : i32, i32, i32
  }
  func.func @transform_1(%arg0: i32, %arg1: i32) -> (i32, i32, i32) {
    %c0_i32 = arith.constant 0 : i32
    %c0_i32_0 = arith.constant 0 : i32
    return %arg0, %arg1, %c0_i32 : i32, i32, i32
  }
  func.func @transform_2(%arg0: i32, %arg1: i32) -> (i32, i32) {
    %c0_i32 = arith.constant 0 : i32
    %c0_i32_0 = arith.constant 0 : i32
    %c0_i32_1 = arith.constant 0 : i32
    return %c0_i32, %c0_i32_0 : i32, i32
  }
  func.func @transform_3(%arg0: i32, %arg1: i32) -> (i32, i32) {
    %c0_i32 = arith.constant 0 : i32
    %c0_i32_0 = arith.constant 0 : i32
    %c0_i32_1 = arith.constant 0 : i32
    return %c0_i32, %c0_i32_0 : i32, i32
  }
  func.func @transform_4(%arg0: i32, %arg1: i32) -> (i32, i32) {
    %c0_i32 = arith.constant 0 : i32
    %c0_i32_0 = arith.constant 0 : i32
    %c0_i32_1 = arith.constant 0 : i32
    return %c0_i32, %c0_i32_0 : i32, i32
  }
  func.func @transform_5(%arg0: i32, %arg1: i32) -> (i32, i32) {
    %c0_i32 = arith.constant 0 : i32
    %c0_i32_0 = arith.constant 0 : i32
    %c0_i32_1 = arith.constant 0 : i32
    return %c0_i32, %c0_i32_0 : i32, i32
  }
  func.func @transform_6(%arg0: i32, %arg1: i32) -> (i32, i32) {
    %c0_i32 = arith.constant 0 : i32
    %c0_i32_0 = arith.constant 0 : i32
    %c0_i32_1 = arith.constant 0 : i32
    return %c0_i32, %c0_i32_0 : i32, i32
  }
  func.func @transform_7(%arg0: i32, %arg1: i32) -> (i32, i32) {
    %c0_i32 = arith.constant 0 : i32
    %c0_i32_0 = arith.constant 0 : i32
    %c0_i32_1 = arith.constant 0 : i32
    return %c0_i32, %c0_i32_0 : i32, i32
  }
  func.func @transform_8(%arg0: i32, %arg1: i32) -> (i32, i32) {
    %c0_i32 = arith.constant 0 : i32
    %c0_i32_0 = arith.constant 0 : i32
    %c0_i32_1 = arith.constant 0 : i32
    return %c0_i32, %c0_i32_0 : i32, i32
  }
  func.func @transform_9(%arg0: i32, %arg1: i32) -> (i32, i32, i32) {
    %c0_i32 = arith.constant 0 : i32
    %c0_i32_0 = arith.constant 0 : i32
    return %arg0, %c0_i32, %arg1 : i32, i32, i32
  }
}

</mosaic_0001>

<llo_original>
// kernel: tpu_custom_call.1
$region0: #{tpu_custom_call.1}
  #allocation0 [shape = 'u32[]', space=smem, size = 0x4, offset = 0x4, fixed_abs, tag = 'smem constant byte address 0x4 - core index']
  #allocation1 [shape = 'u32[144,128]{1,0:T(1,128)}', space=vmem, size = 0x12000, scoped, tag = 'internal scratch']
  #allocation2 [shape = 'f32[16,32]{1,0:T(8,128)}', space=vmem, size = 0x2000, scoped, tag = 'scratch operand']
  #allocation3 [shape = 'f32[3,32]{1,0:T(4,128)}', space=vmem, size = 0x800, scoped, tag = 'scratch operand']
  #allocation4 [shape = 'f32[16,32]{1,0:T(8,128)}', space=vmem, size = 0x2000, scoped, tag = 'scratch operand']
  #allocation5 [shape = 'f32[16,32]{1,0:T(8,128)}', space=vmem, size = 0x2000, scoped, tag = 'scratch operand']
  #allocation6 [shape = 'f32[16,32]{1,0:T(8,128)}', space=vmem, size = 0x2000, scoped, tag = 'scratch operand']
  #allocation7 [shape = 'f32[16,32]{1,0:T(8,128)}', space=vmem, size = 0x2000, scoped, tag = 'scratch operand']
  %s0 = inlined_call_operand.hbm [shape: f32[2,16,32], index: 0, kind: input, shape index: {}]
  %s1 = inlined_call_operand.hbm [shape: f32[2,16,32], index: 1, kind: input, shape index: {}]
  %s2 = inlined_call_operand.hbm [shape: f32[4,32], index: 2, kind: input, shape index: {}]
  %s3 = inlined_call_operand.vmem [shape: f32[1,32], index: 3, kind: input, shape index: {}]
  %s4 = inlined_call_operand.hbm [shape: bf16[32,128], index: 4, kind: input, shape index: {}]
  %s5 = inlined_call_operand.vmem [shape: f32[1,32], index: 5, kind: input, shape index: {}]
  %s6 = inlined_call_operand.vmem [shape: f32[1,32], index: 6, kind: input, shape index: {}]
  %s7 = inlined_call_operand.hbm [shape: f32[16,32], index: 7, kind: input, shape index: {}]
  %s8 = inlined_call_operand.vmem [shape: f32[1,32], index: 8, kind: input, shape index: {}]
  %s9 = inlined_call_operand.vmem [shape: f32[2,32,16], index: 9, kind: output, shape index: {}]
  %s10 = sld [smem:[#allocation0]]
  $region100: #{tpu_custom_call.1} parent=0
    _
  %s12 = ssub.s32 1, %s10
  %s13 = scalar_select 0, %s12, %s10
  $region1: #{tpu_custom_call.1} parent=0
    #allocation8 [shape = 'u8[16384]{0}', space=vmem, size = 0x4000, scoped, tag = 'input window, operand 0']
    #allocation9 [shape = 's32[2]{0}', space=sflag, size = 0x8, scoped, tag = 'scoped memory for tpu_custom_call.1']
    #allocation10 [shape = 'u8[16384]{0}', space=vmem, size = 0x4000, scoped, tag = 'input window, operand 1']
    #allocation11 [shape = 's32[2]{0}', space=sflag, size = 0x8, scoped, tag = 'scoped memory for tpu_custom_call.1']
    #allocation12 [shape = 'u8[2048]{0}', space=vmem, size = 0x800, scoped, tag = 'input window, operand 2, single buffered']
    #allocation13 [shape = 'u8[8192]{0}', space=vmem, size = 0x2000, scoped, tag = 'input window, operand 4, single buffered']
    #allocation14 [shape = 's32[1]{0}', space=sflag, size = 0x4, scoped, tag = 'scoped memory for tpu_custom_call.1']
    #allocation15 [shape = 'u8[8192]{0}', space=vmem, size = 0x2000, scoped, tag = 'input window, operand 7, single buffered']
    %14 = vsyncpa [#allocation9], 0
    %s15 = scalar_lea.sflag [#allocation9], 1
    %16 = vsyncpa %s15, 0
    %17 = vsyncpa [#allocation11], 0
    %s18 = scalar_lea.sflag [#allocation11], 1
    %19 = vsyncpa %s18, 0
    %20 = vsyncpa [#allocation14], 0
    loop: start=0, step=1, limit=4
    $region2: #{tpu_custom_call.1} parent=1 // loop_pre_header
      _
    $region3: #{tpu_custom_call.1} parent=1 // loop_header
      %s22 = sphi 0, %s26
      %p23 = scmp.ge.s32.totalorder %s22, 4
      %s29 = sphi 0, %s41
      %s30 = sphi 0, %s37
      %s31 = sphi 0, %s29
      %s32 = sphi 0, %s30
      %s33 = sphi 0, %s31
      %s34 = sphi 0, %s32
      %s46 = sphi 0, %s48
      %s49 = sphi 0, %s46
      %s50 = sphi 0, %s49
      %s66 = sphi 0, %s50
      %s74 = sphi 0, %s76
      %s77 = sphi 0, %s74
      %s78 = sphi 0, %s77
      %s94 = sphi 0, %s78
      %s98 = sphi 0, %s98
      %s100 = sphi 0, %s98
      %s101 = sphi 0, %s100
      %s115 = sphi 0, %s101
      %s119 = sphi 0, %s119
      %s121 = sphi 0, %s119
      %s122 = sphi 0, %s121
      %s136 = sphi 0, %s122
      %s140 = sphi 0, %s140
      %s142 = sphi 0, %s140
      %s143 = sphi 0, %s142
      %s157 = sphi 0, %s143
      %s161 = sphi 0, %s161
      %s163 = sphi 0, %s161
      %s164 = sphi 0, %s163
      %s178 = sphi 0, %s164
      %s182 = sphi 0, %s182
      %s184 = sphi 0, %s182
      %s185 = sphi 0, %s184
      %s199 = sphi 0, %s185
      %s203 = sphi 0, %s203
      %s205 = sphi 0, %s203
      %s206 = sphi 0, %s205
      %s220 = sphi 0, %s206
      %s224 = sphi 0, %s224
      %s226 = sphi 0, %s224
      %s227 = sphi 0, %s226
      %s241 = sphi 0, %s227
      %s249 = sphi 0, %s251
      %s252 = sphi 0, %s249
      %s253 = sphi 0, %s252
      %s269 = sphi 0, %s253
    $region4: #{tpu_custom_call.1} parent=1 // loop_header_branch
      %25 = sbr.rel (%p23) target = $region8
    $region5: #{tpu_custom_call.1} parent=1 // loop_body
      %s27 = ssub.s32 %s22, 1
      %s28 = ssub.s32 %s22, 2
      %s35 = sadd.s32 1, %s30
      %p36 = scmp.ge.s32.totalorder %s35, 1
      %s37 = scalar_select %p36, 0, %s35
      %s38 = sadd.s32 1, %s29
      %s39 = scalar_select %p36, %s38, %s29
      %p40 = scmp.ge.s32.totalorder %s39, 2
      %s41 = scalar_select %p40, 0, %s39
      %s42 = ssub.s32 %s29, %s41
      %s43 = ssub.s32 %s30, %s37
      %s44 = sor.u32 %s42, %s43
      %p45 = scmp.eq.s32.totalorder %s44, 0
      %s47 = sadd.s32 %s46, 1
      %s48 = scalar_select %p45, %s46, %s47
      %p51 = pneg %p45
      %p52 = scmp.eq.s32.totalorder %s22, 1
      %p53 = por %p51, %p52
      %p54 = scmp.ne.s32.totalorder %s46, %s49
      %p55 = scmp.eq.s32.totalorder %s22, 0
      %p56 = por %p54, %p55
      %p57 = scmp.ne.s32.totalorder %s46, %s49
      %p58 = scmp.eq.s32.totalorder %s27, 1
      %p59 = por %p57, %p58
      %p60 = scmp.ne.s32.totalorder %s49, %s50
      %p61 = scmp.eq.s32.totalorder %s27, 0
      %p62 = por %p60, %p61
      %p63 = scmp.ne.s32.totalorder %s49, %s50
      %p64 = scmp.eq.s32.totalorder %s28, 1
      %p65 = por %p63, %p64
      %p67 = scmp.ne.s32.totalorder %s50, %s66
      %p68 = scmp.eq.s32.totalorder %s28, 0
      %p69 = por %p67, %p68
      %s70 = ssub.s32 %s29, %s41
      %s71 = ssub.s32 %s30, %s37
      %s72 = sor.u32 %s70, %s71
      %p73 = scmp.eq.s32.totalorder %s72, 0
      %s75 = sadd.s32 %s74, 1
      %s76 = scalar_select %p73, %s74, %s75
      %p79 = pneg %p73
      %p80 = scmp.eq.s32.totalorder %s22, 1
      %p81 = por %p79, %p80
      %p82 = scmp.ne.s32.totalorder %s74, %s77
      %p83 = scmp.eq.s32.totalorder %s22, 0
      %p84 = por %p82, %p83
      %p85 = scmp.ne.s32.totalorder %s74, %s77
      %p86 = scmp.eq.s32.totalorder %s27, 1
      %p87 = por %p85, %p86
      %p88 = scmp.ne.s32.totalorder %s77, %s78
      %p89 = scmp.eq.s32.totalorder %s27, 0
      %p90 = por %p88, %p89
      %p91 = scmp.ne.s32.totalorder %s77, %s78
      %p92 = scmp.eq.s32.totalorder %s28, 1
      %p93 = por %p91, %p92
      %p95 = scmp.ne.s32.totalorder %s78, %s94
      %p96 = scmp.eq.s32.totalorder %s28, 0
      %p97 = por %p95, %p96
      %s99 = sadd.s32 %s98, 1
      %p102 = scmp.eq.s32.totalorder %s22, 1
      %p103 = scmp.ne.s32.totalorder %s98, %s100
      %p104 = scmp.eq.s32.totalorder %s22, 0
      %p105 = por %p103, %p104
      %p106 = scmp.ne.s32.totalorder %s98, %s100
      %p107 = scmp.eq.s32.totalorder %s27, 1
      %p108 = por %p106, %p107
      %p109 = scmp.ne.s32.totalorder %s100, %s101
      %p110 = scmp.eq.s32.totalorder %s27, 0
      %p111 = por %p109, %p110
      %p112 = scmp.ne.s32.totalorder %s100, %s101
      %p113 = scmp.eq.s32.totalorder %s28, 1
      %p114 = por %p112, %p113
      %p116 = scmp.ne.s32.totalorder %s101, %s115
      %p117 = scmp.eq.s32.totalorder %s28, 0
      %p118 = por %p116, %p117
      %s120 = sadd.s32 %s119, 1
      %p123 = scmp.eq.s32.totalorder %s22, 1
      %p124 = scmp.ne.s32.totalorder %s119, %s121
      %p125 = scmp.eq.s32.totalorder %s22, 0
      %p126 = por %p124, %p125
      %p127 = scmp.ne.s32.totalorder %s119, %s121
      %p128 = scmp.eq.s32.totalorder %s27, 1
      %p129 = por %p127, %p128
      %p130 = scmp.ne.s32.totalorder %s121, %s122
      %p131 = scmp.eq.s32.totalorder %s27, 0
      %p132 = por %p130, %p131
      %p133 = scmp.ne.s32.totalorder %s121, %s122
      %p134 = scmp.eq.s32.totalorder %s28, 1
      %p135 = por %p133, %p134
      %p137 = scmp.ne.s32.totalorder %s122, %s136
      %p138 = scmp.eq.s32.totalorder %s28, 0
      %p139 = por %p137, %p138
      %s141 = sadd.s32 %s140, 1
      %p144 = scmp.eq.s32.totalorder %s22, 1
      %p145 = scmp.ne.s32.totalorder %s140, %s142
      %p146 = scmp.eq.s32.totalorder %s22, 0
      %p147 = por %p145, %p146
      %p148 = scmp.ne.s32.totalorder %s140, %s142
      %p149 = scmp.eq.s32.totalorder %s27, 1
      %p150 = por %p148, %p149
      %p151 = scmp.ne.s32.totalorder %s142, %s143
      %p152 = scmp.eq.s32.totalorder %s27, 0
      %p153 = por %p151, %p152
      %p154 = scmp.ne.s32.totalorder %s142, %s143
      %p155 = scmp.eq.s32.totalorder %s28, 1
      %p156 = por %p154, %p155
      %p158 = scmp.ne.s32.totalorder %s143, %s157
      %p159 = scmp.eq.s32.totalorder %s28, 0
      %p160 = por %p158, %p159
      %s162 = sadd.s32 %s161, 1
      %p165 = scmp.eq.s32.totalorder %s22, 1
      %p166 = scmp.ne.s32.totalorder %s161, %s163
      %p167 = scmp.eq.s32.totalorder %s22, 0
      %p168 = por %p166, %p167
      %p169 = scmp.ne.s32.totalorder %s161, %s163
      %p170 = scmp.eq.s32.totalorder %s27, 1
      %p171 = por %p169, %p170
      %p172 = scmp.ne.s32.totalorder %s163, %s164
      %p173 = scmp.eq.s32.totalorder %s27, 0
      %p174 = por %p172, %p173
      %p175 = scmp.ne.s32.totalorder %s163, %s164
      %p176 = scmp.eq.s32.totalorder %s28, 1
      %p177 = por %p175, %p176
      %p179 = scmp.ne.s32.totalorder %s164, %s178
      %p180 = scmp.eq.s32.totalorder %s28, 0
      %p181 = por %p179, %p180
      %s183 = sadd.s32 %s182, 1
      %p186 = scmp.eq.s32.totalorder %s22, 1
      %p187 = scmp.ne.s32.totalorder %s182, %s184
      %p188 = scmp.eq.s32.totalorder %s22, 0
      %p189 = por %p187, %p188
      %p190 = scmp.ne.s32.totalorder %s182, %s184
      %p191 = scmp.eq.s32.totalorder %s27, 1
      %p192 = por %p190, %p191
      %p193 = scmp.ne.s32.totalorder %s184, %s185
      %p194 = scmp.eq.s32.totalorder %s27, 0
      %p195 = por %p193, %p194
      %p196 = scmp.ne.s32.totalorder %s184, %s185
      %p197 = scmp.eq.s32.totalorder %s28, 1
      %p198 = por %p196, %p197
      %p200 = scmp.ne.s32.totalorder %s185, %s199
      %p201 = scmp.eq.s32.totalorder %s28, 0
      %p202 = por %p200, %p201
      %s204 = sadd.s32 %s203, 1
      %p207 = scmp.eq.s32.totalorder %s22, 1
      %p208 = scmp.ne.s32.totalorder %s203, %s205
      %p209 = scmp.eq.s32.totalorder %s22, 0
      %p210 = por %p208, %p209
      %p211 = scmp.ne.s32.totalorder %s203, %s205
      %p212 = scmp.eq.s32.totalorder %s27, 1
      %p213 = por %p211, %p212
      %p214 = scmp.ne.s32.totalorder %s205, %s206
      %p215 = scmp.eq.s32.totalorder %s27, 0
      %p216 = por %p214, %p215
      %p217 = scmp.ne.s32.totalorder %s205, %s206
      %p218 = scmp.eq.s32.totalorder %s28, 1
      %p219 = por %p217, %p218
      %p221 = scmp.ne.s32.totalorder %s206, %s220
      %p222 = scmp.eq.s32.totalorder %s28, 0
      %p223 = por %p221, %p222
      %s225 = sadd.s32 %s224, 1
      %p228 = scmp.eq.s32.totalorder %s22, 1
      %p229 = scmp.ne.s32.totalorder %s224, %s226
      %p230 = scmp.eq.s32.totalorder %s22, 0
      %p231 = por %p229, %p230
      %p232 = scmp.ne.s32.totalorder %s224, %s226
      %p233 = scmp.eq.s32.totalorder %s27, 1
      %p234 = por %p232, %p233
      %p235 = scmp.ne.s32.totalorder %s226, %s227
      %p236 = scmp.eq.s32.totalorder %s27, 0
      %p237 = por %p235, %p236
      %p238 = scmp.ne.s32.totalorder %s226, %s227
      %p239 = scmp.eq.s32.totalorder %s28, 1
      %p240 = por %p238, %p239
      %p242 = scmp.ne.s32.totalorder %s227, %s241
      %p243 = scmp.eq.s32.totalorder %s28, 0
      %p244 = por %p242, %p243
      %s245 = ssub.s32 %s29, %s41
      %s246 = ssub.s32 %s30, %s37
      %s247 = sor.u32 %s245, %s246
      %p248 = scmp.eq.s32.totalorder %s247, 0
      %s250 = sadd.s32 %s249, 1
      %s251 = scalar_select %p248, %s249, %s250
      %p254 = pneg %p248
      %p255 = scmp.eq.s32.totalorder %s22, 1
      %p256 = por %p254, %p255
      %p257 = scmp.ne.s32.totalorder %s249, %s252
      %p258 = scmp.eq.s32.totalorder %s22, 0
      %p259 = por %p257, %p258
      %p260 = scmp.ne.s32.totalorder %s249, %s252
      %p261 = scmp.eq.s32.totalorder %s27, 1
      %p262 = por %p260, %p261
      %p263 = scmp.ne.s32.totalorder %s252, %s253
      %p264 = scmp.eq.s32.totalorder %s27, 0
      %p265 = por %p263, %p264
      %p266 = scmp.ne.s32.totalorder %s252, %s253
      %p267 = scmp.eq.s32.totalorder %s28, 1
      %p268 = por %p266, %p267
      %p270 = scmp.ne.s32.totalorder %s253, %s269
      %p271 = scmp.eq.s32.totalorder %s28, 0
      %p272 = por %p270, %p271
      %p273 = scmp.le.s32.totalorder 1, %s22
      %p274 = scmp.lt.s32.totalorder %s22, 3
      %p275 = pnand %p273, %p274
      %p276 = pneg %p275
      // Predicated region
      $region9: #{tpu_custom_call.1} parent=5 // pred_check
        _
      $region10: #{tpu_custom_call.1} parent=5 // pred_check_branch
        %278 = sbr.rel (%p275) target = $region12
      $region11: #{tpu_custom_call.1} parent=5 // pred_region
        %s279 = ssub.s32 %s22, 1
        // Predicated region
        $region13: #{tpu_custom_call.1} parent=11 // pred_check
          %p280 = pneg %p111
        $region14: #{tpu_custom_call.1} parent=11 // pred_check_branch
          %282 = sbr.rel (%p280) target = $region16
        $region15: #{tpu_custom_call.1} parent=11 // pred_region
          %s284 = ssub.s32 64, 64
          %285 = vsyncadd [#allocation11], %s284
          %s287 = sshll.u32 [#allocation12], 4
          %s288 = int_to_ptr.vmem [resolvable:$true] %s287
          %290 = dma.hbm_to_vmem [thread:$0]  %s2, 64, %s288, [#allocation11]
        $region16: #{tpu_custom_call.1} parent=11 // pred_fallthru
          _
        // Predicated region
        $region17: #{tpu_custom_call.1} parent=11 // pred_check
          %p291 = pneg %p132
        $region18: #{tpu_custom_call.1} parent=11 // pred_check_branch
          %293 = sbr.rel (%p291) target = $region20
        $region19: #{tpu_custom_call.1} parent=11 // pred_region
          _
        $region20: #{tpu_custom_call.1} parent=11 // pred_fallthru
          _
        // Predicated region
        $region21: #{tpu_custom_call.1} parent=11 // pred_check
          %p294 = pneg %p153
        $region22: #{tpu_custom_call.1} parent=11 // pred_check_branch
          %296 = sbr.rel (%p294) target = $region24
        $region23: #{tpu_custom_call.1} parent=11 // pred_region
          %s298 = ssub.s32 256, 256
          %299 = vsyncadd [#allocation14], %s298
          %s300 = sshll.u32 [#allocation13], 4
          %s301 = int_to_ptr.vmem [resolvable:$true] %s300
          %306 = dma.hbm_to_vmem [thread:$0]  %s4, 256, %s301, [#allocation14], 64, 64, 4
        $region24: #{tpu_custom_call.1} parent=11 // pred_fallthru
          _
        // Predicated region
        $region25: #{tpu_custom_call.1} parent=11 // pred_check
          %p307 = pneg %p174
        $region26: #{tpu_custom_call.1} parent=11 // pred_check_branch
          %309 = sbr.rel (%p307) target = $region28
        $region27: #{tpu_custom_call.1} parent=11 // pred_region
          _
        $region28: #{tpu_custom_call.1} parent=11 // pred_fallthru
          _
        // Predicated region
        $region29: #{tpu_custom_call.1} parent=11 // pred_check
          %p310 = pneg %p195
        $region30: #{tpu_custom_call.1} parent=11 // pred_check_branch
          %312 = sbr.rel (%p310) target = $region32
        $region31: #{tpu_custom_call.1} parent=11 // pred_region
          _
        $region32: #{tpu_custom_call.1} parent=11 // pred_fallthru
          _
        // Predicated region
        $region33: #{tpu_custom_call.1} parent=11 // pred_check
          %p313 = pneg %p216
        $region34: #{tpu_custom_call.1} parent=11 // pred_check_branch
          %315 = sbr.rel (%p313) target = $region36
        $region35: #{tpu_custom_call.1} parent=11 // pred_region
          %s317 = ssub.s32 256, 256
          %318 = vsyncadd [#allocation14], %s317
          %s319 = sshll.u32 [#allocation15], 4
          %s320 = int_to_ptr.vmem [resolvable:$true] %s319
          %325 = dma.hbm_to_vmem [thread:$0]  %s7, 256, %s320, [#allocation14], 128, 128, 8
        $region36: #{tpu_custom_call.1} parent=11 // pred_fallthru
          _
        // Predicated region
        $region37: #{tpu_custom_call.1} parent=11 // pred_check
          %p326 = pneg %p237
        $region38: #{tpu_custom_call.1} parent=11 // pred_check_branch
          %328 = sbr.rel (%p326) target = $region40
        $region39: #{tpu_custom_call.1} parent=11 // pred_region
          _
        $region40: #{tpu_custom_call.1} parent=11 // pred_fallthru
          _
      $region12: #{tpu_custom_call.1} parent=5 // pred_fallthru
        _
      %p329 = scmp.lt.s32.totalorder %s22, 2
      // Predicated region
      $region41: #{tpu_custom_call.1} parent=5 // pred_check
        %p330 = pneg %p329
      $region42: #{tpu_custom_call.1} parent=5 // pred_check_branch
        %332 = sbr.rel (%p330) target = $region44
      $region43: #{tpu_custom_call.1} parent=5 // pred_region
        // Predicated region
        $region45: #{tpu_custom_call.1} parent=43 // pred_check
          %p333 = pneg %p56
        $region46: #{tpu_custom_call.1} parent=43 // pred_check_branch
          %335 = sbr.rel (%p333) target = $region48
        $region47: #{tpu_custom_call.1} parent=43 // pred_region
          %s336 = sand.u32 %s46, 1
          %s337 = scalar_lea.sflag [#allocation9], %s336
          %s338 = sand.u32 %s46, 1
          %s339 = smul.addr %s338, 16
          %s340 = scalar_lea.vmem [#allocation8], %s339
          %s341 = smul.u32 2, %s30
          %s343 = ssub.s32 256, 256
          %344 = vsyncadd %s337, %s343
          %s345 = smul.addr %s29, 2
          %s346 = sadd.s32 %s341, %s345
          %s347 = smul.addr %s346, 128
          %s348 = scalar_lea.hbm %s0, %s347
          %s349 = sshll.u32 %s340, 4
          %s350 = int_to_ptr.vmem [resolvable:$true] %s349
          %355 = dma.hbm_to_vmem [thread:$0]  %s348, 256, %s350, %s337, 128, 128, 8
        $region48: #{tpu_custom_call.1} parent=43 // pred_fallthru
          _
        // Predicated region
        $region49: #{tpu_custom_call.1} parent=43 // pred_check
          %p356 = pneg %p84
        $region50: #{tpu_custom_call.1} parent=43 // pred_check_branch
          %358 = sbr.rel (%p356) target = $region52
        $region51: #{tpu_custom_call.1} parent=43 // pred_region
          %s359 = sand.u32 %s22, 1
          %s360 = scalar_lea.sflag [#allocation11], %s359
          %s361 = sand.u32 %s74, 1
          %s362 = smul.addr %s361, 16
          %s363 = scalar_lea.vmem [#allocation10], %s362
          %s364 = smul.u32 2, %s30
          %s366 = ssub.s32 256, 256
          %367 = vsyncadd %s360, %s366
          %s368 = smul.addr %s29, 2
          %s369 = sadd.s32 %s364, %s368
          %s370 = smul.addr %s369, 128
          %s371 = scalar_lea.hbm %s1, %s370
          %s372 = sshll.u32 %s363, 4
          %s373 = int_to_ptr.vmem [resolvable:$true] %s372
          %378 = dma.hbm_to_vmem [thread:$0]  %s371, 256, %s373, %s360, 128, 128, 8
        $region52: #{tpu_custom_call.1} parent=43 // pred_fallthru
          _
      $region44: #{tpu_custom_call.1} parent=5 // pred_fallthru
        _
      %p379 = scmp.le.s32.totalorder 1, %s22
      %p380 = scmp.lt.s32.totalorder %s22, 3
      %p381 = pnand %p379, %p380
      %p382 = pneg %p381
      // Predicated region
      $region53: #{tpu_custom_call.1} parent=5 // pred_check
        _
      $region54: #{tpu_custom_call.1} parent=5 // pred_check_branch
        %384 = sbr.rel (%p381) target = $region56
      $region55: #{tpu_custom_call.1} parent=5 // pred_region
        %s385 = ssub.s32 %s22, 1
        %s386 = sand.u32 %s49, 1
        %s387 = scalar_lea.sflag [#allocation9], %s386
        %s388 = sand.u32 %s49, 1
        %s389 = smul.addr %s388, 16
        %s390 = scalar_lea.vmem [#allocation8], %s389
        // Predicated region
        $region57: #{tpu_custom_call.1} parent=55 // pred_check
          %p391 = pneg %p62
        $region58: #{tpu_custom_call.1} parent=55 // pred_check_branch
          %393 = sbr.rel (%p391) target = $region60
        $region59: #{tpu_custom_call.1} parent=55 // pred_region
          %394 = dma.done %s387, 256
        $region60: #{tpu_custom_call.1} parent=55 // pred_fallthru
          _
        %s395 = sand.u32 %s27, 1
        %s396 = scalar_lea.sflag [#allocation11], %s395
        %s397 = sand.u32 %s77, 1
        %s398 = smul.addr %s397, 16
        %s399 = scalar_lea.vmem [#allocation10], %s398
        // Predicated region
        $region61: #{tpu_custom_call.1} parent=55 // pred_check
          %p400 = pneg %p90
        $region62: #{tpu_custom_call.1} parent=55 // pred_check_branch
          %402 = sbr.rel (%p400) target = $region64
        $region63: #{tpu_custom_call.1} parent=55 // pred_region
          %403 = dma.done %s396, 256
        $region64: #{tpu_custom_call.1} parent=55 // pred_fallthru
          _
        // Predicated region
        $region65: #{tpu_custom_call.1} parent=55 // pred_check
          %p404 = pneg %p111
        $region66: #{tpu_custom_call.1} parent=55 // pred_check_branch
          %406 = sbr.rel (%p404) target = $region68
        $region67: #{tpu_custom_call.1} parent=55 // pred_region
          %407 = dma.done [#allocation11], 64
        $region68: #{tpu_custom_call.1} parent=55 // pred_fallthru
          _
        // Predicated region
        $region69: #{tpu_custom_call.1} parent=55 // pred_check
          %p408 = pneg %p153
        $region70: #{tpu_custom_call.1} parent=55 // pred_check_branch
          %410 = sbr.rel (%p408) target = $region72
        $region71: #{tpu_custom_call.1} parent=55 // pred_region
          %411 = dma.done [#allocation14], 256
        $region72: #{tpu_custom_call.1} parent=55 // pred_fallthru
          _
        // Predicated region
        $region73: #{tpu_custom_call.1} parent=55 // pred_check
          %p412 = pneg %p216
        $region74: #{tpu_custom_call.1} parent=55 // pred_check_branch
          %414 = sbr.rel (%p412) target = $region76
        $region75: #{tpu_custom_call.1} parent=55 // pred_region
          %415 = dma.done [#allocation14], 256
        $region76: #{tpu_custom_call.1} parent=55 // pred_fallthru
          _
        %s416 = sand.u32 %s49, 1
        %s417 = scalar_lea.sflag [#allocation9], %s416
        %s418 = sand.u32 %s49, 1
        %s419 = smul.addr %s418, 16
        %s420 = scalar_lea.vmem [#allocation8], %s419
        %p421 = pneg %p62
        %p422 = pneg %p59
        %s423 = sand.u32 %s27, 1
        %s424 = scalar_lea.sflag [#allocation11], %s423
        %s425 = sand.u32 %s77, 1
        %s426 = smul.addr %s425, 16
        %s427 = scalar_lea.vmem [#allocation10], %s426
        %p428 = pneg %p90
        %p429 = pneg %p87
        %p430 = pneg %p111
        %p431 = pneg %p108
        %p432 = pneg %p132
        %p433 = pneg %p129
        %p434 = pneg %p153
        %p435 = pneg %p150
        %p436 = pneg %p174
        %p437 = pneg %p171
        %p438 = pneg %p195
        %p439 = pneg %p192
        %p440 = pneg %p216
        %p441 = pneg %p213
        %p442 = pneg %p237
        %p443 = pneg %p234
        %p444 = pneg %p265
        %p445 = pneg %p262
        %p446 = scmp.lt.s32.totalorder %s31, 1
        %s447 = scalar_select %p446, %s31, 1
        %p448 = scmp.lt.s32.totalorder %s32, 0
        %s449 = scalar_select %p448, %s32, 0
        %s450 = smul.addr %s447, 4
        %s451 = sadd.s32 %s449, %s450
        %s452 = smul.addr %s451, 8
        %s453 = scalar_lea.vmem %s9, %s452
        %s454 = smul.u32 2, %s32
        %s455 = smul.u32 2, %s32
        %p456 = scmp.lt.s32.totalorder %s31, 1
        %s457 = scalar_select %p456, %s31, 1
        %p458 = scmp.lt.s32.totalorder %s32, 0
        %s459 = scalar_select %p458, %s32, 0
        %s460 = smul.addr %s457, 4
        %s461 = sadd.s32 %s459, %s460
        %s462 = smul.addr %s461, 8
        %s463 = scalar_lea.vmem %s9, %s462
        %p465 = scmp.eq.s32.totalorder %s32, 0
        // Predicated region
        $region77: #{tpu_custom_call.1} parent=55 // pred_check
          %p466 = pneg %p465
        $region78: #{tpu_custom_call.1} parent=55 // pred_check_branch
          %468 = sbr.rel (%p466) target = $region80
        $region79: #{tpu_custom_call.1} parent=55 // pred_region
          %vm469 = vcmask 261120
          %470 = vst.msk [vmem:[#allocation2] sm:$0xff] %vm469, 0.0
          %471 = vst.msk [vmem:[#allocation2 + $0x8] sm:$0xff] %vm469, 0.0
          %vm472 = vcmask 256000
          %473 = vst.msk [vmem:[#allocation3] sm:$0x7] %vm472, 0.0
        $region80: #{tpu_custom_call.1} parent=55 // pred_fallthru
          _
        %v474 = vld [vmem:[%s390] sm:$0xff]
        %v475 = vld [vmem:[%s390 + $0x8] sm:$0xff]
        %v476 = vld [vmem:[#allocation3] sm:$0x7]
        %vm479 = vcmask 1042432
        %v480 = vrot.slane %v474, 5
        %v481 = vrot.slane %v475, 5
        %v482 = vsel %vm479, %v480, %v481
        %v486 = vsel %vm479, %v476, %v480
        %v487 = vld [vmem:[%s3] sm:$0x1]
        %v489 = vlaneseq
        %v490 = vshrl.u32 %v489, 7
        %v491 = vsub.s32 0, %v490
        %v492 = vrot.slane %v487, %v491
        %v494 = vld [vmem:[#allocation12] sm:$0x1]
        %v495 = vlaneseq
        %v496 = vshrl.u32 %v495, 7
        %v497 = vsub.s32 0, %v496
        %v498 = vrot.slane %v494, %v497
        %v499 = vmul.f32 %v486, %v498
        %v500 = vmul.f32 %v482, %v498
        %v501 = vadd.f32 %v492, %v499
        %v502 = vadd.f32 %v492, %v500
        %v503 = vld [vmem:[#allocation12 + $0x1] sm:$0x1]
        %v504 = vlaneseq
        %v505 = vshrl.u32 %v504, 7
        %v506 = vsub.s32 0, %v505
        %v507 = vrot.slane %v503, %v506
        %v508 = vmul.f32 %v486, %v507
        %v509 = vmul.f32 %v482, %v507
        %v510 = vmul.f32 %v481, %v507
        %vm514 = vcmask 1046528
        %v515 = vrot.slane %v508, 1
        %v516 = vrot.slane %v509, 1
        %v517 = vsel %vm514, %v515, %v516
        %v518 = vrot.slane %v510, 1
        %v519 = vsel %vm514, %v516, %v518
        %v522 = vadd.f32 %v501, %v517
        %v523 = vadd.f32 %v502, %v519
        %v524 = vld [vmem:[#allocation12 + $0x2] sm:$0x1]
        %v525 = vlaneseq
        %v526 = vshrl.u32 %v525, 7
        %v527 = vsub.s32 0, %v526
        %v528 = vrot.slane %v524, %v527
        %v529 = vmul.f32 %v486, %v528
        %v530 = vmul.f32 %v482, %v528
        %v531 = vmul.f32 %v481, %v528
        %vm535 = vcmask 1045504
        %v536 = vrot.slane %v529, 2
        %v537 = vrot.slane %v530, 2
        %v538 = vsel %vm535, %v536, %v537
        %v539 = vrot.slane %v531, 2
        %v540 = vsel %vm535, %v537, %v539
        %v543 = vadd.f32 %v522, %v538
        %v544 = vadd.f32 %v523, %v540
        %v545 = vld [vmem:[#allocation12 + $0x3] sm:$0x1]
        %v546 = vlaneseq
        %v547 = vshrl.u32 %v546, 7
        %v548 = vsub.s32 0, %v547
        %v549 = vrot.slane %v545, %v548
        %v550 = vmul.f32 %v474, %v549
        %v551 = vmul.f32 %v475, %v549
        %v552 = vadd.f32 %v543, %v550
        %v553 = vadd.f32 %v544, %v551
        %v554 = vxor.u32 %v552, 2147483648
        %v555 = vxor.u32 %v553, 2147483648
        %v556 = vmul.f32 %v554, 1.442695
        %v557 = vpow.pop %v556
        %v558 = vmul.f32 %v555, 1.442695
        %v559 = vpow.pop %v558
        %v560 = vadd.f32 %v557, 1.0
        %v561 = vadd.f32 %v559, 1.0
        %v562 = vrcp.pop %v560
        %v563 = vmul.f32 1.0, %v562
        %v564 = vrcp.pop %v561
        %v565 = vmul.f32 1.0, %v564
        %v566 = vmul.f32 %v552, %v563
        %v567 = vmul.f32 %v553, %v565
        %vm568 = vcmask 261125
        %569 = vst.msk [vmem:[#allocation3 - $0x5] sm:$0xe0] %vm568, %v475
        %v570 = vpack.c.bf16 %v567, %v566
        %v571 = vld [vmem:[#allocation13] sm:$0xf]
        %v572 = vld [vmem:[#allocation13 + $0x4] sm:$0xf]
        %v573 = vld [vmem:[#allocation13 + $0x8] sm:$0xf]
        %v574 = vld [vmem:[#allocation13 + $0xc] sm:$0xf]
        %v579 = vunpack.c.l.b16 %v571
        %v580 = vunpack.c.l.b16 %v572
        %v581 = vunpack.c.l.b16 %v573
        %v582 = vunpack.c.l.b16 %v574
        %v583 = vpack.c.b16 %v580, %v579
        %v584 = vpack.c.b16 %v582, %v581
        %vm587 = vcmask 261120
        %v589 = vsel %vm587, %v570, 0
        %591 = vmatprep.subr.bf16.mxu0 0
        %592 = vmatpush1.bf16.msra.mxu0 0
        %593 = vmatprep.subr.bf16.mxu0 0
        %594 = vmatpush1.bf16.msra.mxu0 0
        %595 = vmatprep.subr.bf16.mxu0 0
        %596 = vmatpush1.bf16.msra.mxu0 0
        %597 = vmatprep.subr.bf16.mxu0 0
        %598 = vmatpush1.bf16.msra.mxu0 0
        %599 = vmatprep.subr.bf16.mxu0 0
        %600 = vmatpush1.bf16.msra.mxu0 0
        %601 = vmatprep.subr.bf16.mxu0 0
        %602 = vmatpush1.bf16.msra.mxu0 0
        %603 = vmatprep.subr.bf16.mxu0 0
        %604 = vmatpush1.bf16.msra.mxu0 %v584
        %605 = vmatprep.subr.bf16.mxu0 0
        %606 = vmatpush1.bf16.msra.mxu0 %v583
        %607 = vmatprep.subr.bf16.mxu0 0
        %608 = vmatpush2.bf16.msra.mxu0 0
        %609 = vmatprep.subr.bf16.mxu0 0
        %610 = vmatpush2.bf16.msra.mxu0 0
        %611 = vmatprep.subr.bf16.mxu0 0
        %612 = vmatpush2.bf16.msra.mxu0 0
        %613 = vmatprep.subr.bf16.mxu0 0
        %614 = vmatpush2.bf16.msra.mxu0 0
        %615 = vmatprep.subr.bf16.mxu0 0
        %616 = vmatpush2.bf16.msra.mxu0 0
        %617 = vmatprep.subr.bf16.mxu0 0
        %618 = vmatpush2.bf16.msra.mxu0 0
        %619 = vmatprep.subr.bf16.mxu0 0
        %620 = vmatpush2.bf16.msra.mxu0 0
        %621 = vmatprep.subr.bf16.mxu0 0
        %622 = vmatpush2.bf16.msra.mxu0 0
        %623 = vmatprep.mubr.bf16.mxu0 0
        %624 = vmatmul.mubr.bf16.gmra.mxu0 %v589
        %v625 = vpop.f32.mrf.mxu0
        %v626 = vadd.f32 0.0, %v625
        %v627 = vpop.f32.mrf.mxu0
        %v628 = vpop.f32.mrf.mxu0
        %v629 = vadd.f32 0.0, %v628
        %v630 = vpop.f32.mrf.mxu0
        %631 = vdwg.mxu0
        %632 = vst.msk [vmem:[#allocation6] sm:$0xff] %vm587, %v626
        %633 = vst.msk [vmem:[#allocation6 + $0x8] sm:$0xff] %vm587, %v629
        %v634 = vld [vmem:[%s6] sm:$0x1]
        %v636 = vlaneseq
        %v637 = vshrl.u32 %v636, 7
        %v638 = vsub.s32 0, %v637
        %v639 = vrot.slane %v634, %v638
        %v641 = vld [vmem:[%s5] sm:$0x1]
        %643 = vset.pattern.permute.xlu0 32
        %644 = vperm.xlu0 %643, %v626
        %v645 = vpop.permute.xlu0 %644
        %648 = vset.pattern.permute.xlu0 32
        %649 = vperm.xlu0 %648, %v629
        %v650 = vpop.permute.xlu0 %649
        %v653 = vlaneseq
        %v654 = vshrl.u32 %v653, 7
        %v655 = vsub.s32 0, %v654
        %v656 = vrot.slane %v641, %v655
        %v658 = vmul.f32 %v645, %v656
        %v659 = vmul.f32 %v650, %v656
        %v660 = vadd.f32 %v639, %v658
        %v661 = vadd.f32 %v639, %v659
        %v662 = vmax.f32 %v660, 0.0
        %v663 = vmax.f32 %v661, 0.0
        %vm664 = vcmp.ne.f32.partialorder %v660, %v660
        %vm665 = vcmp.ne.f32.partialorder %v661, %v661
        %v666 = vadd.f32 %v660, 0.0
        %v667 = vadd.f32 %v661, 0.0
        %v668 = vand.u32 2147483647, %v660
        %v669 = vand.u32 2147483647, %v661
        %v670 = vsub.f32 0.0, %v668
        %v671 = vsub.f32 0.0, %v669
        %v672 = vmul.f32 %v670, 1.442695
        %v673 = vpow.pop %v672
        %v674 = vmul.f32 %v671, 1.442695
        %v675 = vpow.pop %v674
        %v676 = vadd.f32 %v673, 1.0
        %v677 = vlog2.pop %v676
        %v678 = vmul.f32 %v677, 0.6931472
        %v679 = vmul.f32 -0.5, %v673
        %v680 = vadd.f32 %v679, 1.0
        %v681 = vmul.f32 %v680, %v673
        %v682 = vand.u32 2147483647, %v673
        %vm683 = vcmp.lt.f32.partialorder %v682, 0.0004427343
        %v684 = vsel %vm683, %v681, %v678
        %v685 = vadd.f32 %v675, 1.0
        %v686 = vlog2.pop %v685
        %v687 = vmul.f32 %v686, 0.6931472
        %v688 = vmul.f32 -0.5, %v675
        %v689 = vadd.f32 %v688, 1.0
        %v690 = vmul.f32 %v689, %v675
        %v691 = vand.u32 2147483647, %v675
        %vm692 = vcmp.lt.f32.partialorder %v691, 0.0004427343
        %v693 = vsel %vm692, %v690, %v687
        %v694 = vadd.f32 %v662, %v684
        %v695 = vadd.f32 %v663, %v693
        %v696 = vsel %vm664, %v666, %v694
        %v697 = vsel %vm665, %v667, %v695
        %698 = vst.msk [vmem:[#allocation4] sm:$0xff] %vm587, %v696
        %699 = vst.msk [vmem:[#allocation4 + $0x8] sm:$0xff] %vm587, %v697
        %v700 = vmul.f32 %v696, %v566
        %v701 = vmul.f32 %v697, %v567
        %702 = vst.msk [vmem:[#allocation5] sm:$0xff] %vm587, %v700
        %703 = vst.msk [vmem:[#allocation5 + $0x8] sm:$0xff] %vm587, %v701
        %v704 = vld [vmem:[#allocation15] sm:$0xff]
        %v705 = vld [vmem:[#allocation15 + $0x8] sm:$0xff]
        %v706 = vld [vmem:[#allocation2] sm:$0xff]
        %v707 = vld [vmem:[#allocation2 + $0x8] sm:$0xff]
        loop: start=0, step=1, limit=2
        $region81: #{tpu_custom_call.1} parent=55 // loop_pre_header
          _
        $region82: #{tpu_custom_call.1} parent=55 // loop_header
          %s709 = sphi 0, %s713
          %p710 = scmp.ge.s32.totalorder %s709, 2
          %v714 = vphi %v706, %v1247
          %v715 = vphi %v707, %v1248
        $region83: #{tpu_custom_call.1} parent=55 // loop_header_branch
          %712 = sbr.rel (%p710) target = $region87
        $region84: #{tpu_custom_call.1} parent=55 // loop_body
          %s716 = smul.u32 %s709, 8
          %s717 = scalar_lea.vmem [#allocation4], %s716
          %v718 = vld [vmem:[%s717] sm:$0xff]
          %s719 = scalar_lea.vmem [#allocation5], %s716
          %v720 = vld [vmem:[%s719] sm:$0xff]
          %s721 = scalar_lea.vmem [#allocation6], %s716
          %v722 = vld [vmem:[%s721] sm:$0xff]
          %v724 = vcombine.high %v718, %v718
          %v726 = vunpack.c.l.s4 1966171168
          %v727 = vunpack.c.0.s8 %v726
          %v728 = vlaneseq
          %v729 = vshrl.u32 %v728, 7
          %v730 = vsub.s32 %v727, %v729
          %v731 = vrot.slane %v718, %v730
          %v733 = vunpack.c.l.s4 1966171168
          %v734 = vunpack.c.0.s8 %v733
          %v735 = vlaneseq
          %v736 = vshrl.u32 %v735, 7
          %v737 = vsub.s32 %v734, %v736
          %v738 = vrot.slane %v724, %v737
          %v739 = vcombine.high %v731, %v731
          %v740 = vcombine.high %v738, %v738
          %v742 = vunpack.c.l.s4 1966171168
          %v743 = vunpack.c.0.s8 %v742
          %v744 = vlaneseq
          %v745 = vshrl.u32 %v744, 7
          %v746 = vsub.s32 %v743, %v745
          %v747 = vrot.slane %v731, %v746
          %v749 = vunpack.c.l.s4 1966171168
          %v750 = vunpack.c.0.s8 %v749
          %v751 = vlaneseq
          %v752 = vshrl.u32 %v751, 7
          %v753 = vsub.s32 %v750, %v752
          %v754 = vrot.slane %v738, %v753
          %v756 = vunpack.c.l.s4 1966171168
          %v757 = vunpack.c.0.s8 %v756
          %v758 = vlaneseq
          %v759 = vshrl.u32 %v758, 7
          %v760 = vsub.s32 %v757, %v759
          %v761 = vrot.slane %v739, %v760
          %v763 = vunpack.c.l.s4 1966171168
          %v764 = vunpack.c.0.s8 %v763
          %v765 = vlaneseq
          %v766 = vshrl.u32 %v765, 7
          %v767 = vsub.s32 %v764, %v766
          %v768 = vrot.slane %v740, %v767
          %v769 = vcombine.high %v747, %v747
          %v770 = vcombine.high %v754, %v754
          %v771 = vcombine.high %v761, %v761
          %v772 = vcombine.high %v768, %v768
          %v773 = vlaneseq
          %v774 = vshrl.u32 %v773, 7
          %v775 = vsub.s32 0, %v774
          %v776 = vrot.slane %v747, %v775
          %v777 = vlaneseq
          %v778 = vshrl.u32 %v777, 7
          %v779 = vsub.s32 0, %v778
          %v780 = vrot.slane %v761, %v779
          %v781 = vlaneseq
          %v782 = vshrl.u32 %v781, 7
          %v783 = vsub.s32 0, %v782
          %v784 = vrot.slane %v769, %v783
          %v785 = vlaneseq
          %v786 = vshrl.u32 %v785, 7
          %v787 = vsub.s32 0, %v786
          %v788 = vrot.slane %v771, %v787
          %v789 = vlaneseq
          %v790 = vshrl.u32 %v789, 7
          %v791 = vsub.s32 0, %v790
          %v792 = vrot.slane %v754, %v791
          %v793 = vlaneseq
          %v794 = vshrl.u32 %v793, 7
          %v795 = vsub.s32 0, %v794
          %v796 = vrot.slane %v768, %v795
          %v797 = vlaneseq
          %v798 = vshrl.u32 %v797, 7
          %v799 = vsub.s32 0, %v798
          %v800 = vrot.slane %v770, %v799
          %v801 = vlaneseq
          %v802 = vshrl.u32 %v801, 7
          %v803 = vsub.s32 0, %v802
          %v804 = vrot.slane %v772, %v803
          %v813 = vmul.f32 %v776, %v704
          %v814 = vmul.f32 %v776, %v705
          %v815 = vmul.f32 %v780, %v704
          %v816 = vmul.f32 %v780, %v705
          %v817 = vmul.f32 %v784, %v704
          %v818 = vmul.f32 %v784, %v705
          %v819 = vmul.f32 %v788, %v704
          %v820 = vmul.f32 %v788, %v705
          %v821 = vmul.f32 %v792, %v704
          %v822 = vmul.f32 %v792, %v705
          %v823 = vmul.f32 %v796, %v704
          %v824 = vmul.f32 %v796, %v705
          %v825 = vmul.f32 %v800, %v704
          %v826 = vmul.f32 %v800, %v705
          %v827 = vmul.f32 %v804, %v704
          %v828 = vmul.f32 %v804, %v705
          %v829 = vmul.f32 %v813, 1.442695
          %v830 = vpow.pop %v829
          %v831 = vmul.f32 %v814, 1.442695
          %v832 = vpow.pop %v831
          %v833 = vmul.f32 %v815, 1.442695
          %v834 = vpow.pop %v833
          %v835 = vmul.f32 %v816, 1.442695
          %v836 = vpow.pop %v835
          %v837 = vmul.f32 %v817, 1.442695
          %v838 = vpow.pop %v837
          %v839 = vmul.f32 %v818, 1.442695
          %v840 = vpow.pop %v839
          %v841 = vmul.f32 %v819, 1.442695
          %v842 = vpow.pop %v841
          %v843 = vmul.f32 %v820, 1.442695
          %v844 = vpow.pop %v843
          %v845 = vmul.f32 %v821, 1.442695
          %v846 = vpow.pop %v845
          %v847 = vmul.f32 %v822, 1.442695
          %v848 = vpow.pop %v847
          %v849 = vmul.f32 %v823, 1.442695
          %v850 = vpow.pop %v849
          %v851 = vmul.f32 %v824, 1.442695
          %v852 = vpow.pop %v851
          %v853 = vmul.f32 %v825, 1.442695
          %v854 = vpow.pop %v853
          %v855 = vmul.f32 %v826, 1.442695
          %v856 = vpow.pop %v855
          %v857 = vmul.f32 %v827, 1.442695
          %v858 = vpow.pop %v857
          %v859 = vmul.f32 %v828, 1.442695
          %v860 = vpow.pop %v859
          %v862 = vcombine.high %v720, %v720
          %v864 = vunpack.c.l.s4 1966171168
          %v865 = vunpack.c.0.s8 %v864
          %v866 = vlaneseq
          %v867 = vshrl.u32 %v866, 7
          %v868 = vsub.s32 %v865, %v867
          %v869 = vrot.slane %v720, %v868
          %v871 = vunpack.c.l.s4 1966171168
          %v872 = vunpack.c.0.s8 %v871
          %v873 = vlaneseq
          %v874 = vshrl.u32 %v873, 7
          %v875 = vsub.s32 %v872, %v874
          %v876 = vrot.slane %v862, %v875
          %v877 = vcombine.high %v869, %v869
          %v878 = vcombine.high %v876, %v876
          %v880 = vunpack.c.l.s4 1966171168
          %v881 = vunpack.c.0.s8 %v880
          %v882 = vlaneseq
          %v883 = vshrl.u32 %v882, 7
          %v884 = vsub.s32 %v881, %v883
          %v885 = vrot.slane %v869, %v884
          %v887 = vunpack.c.l.s4 1966171168
          %v888 = vunpack.c.0.s8 %v887
          %v889 = vlaneseq
          %v890 = vshrl.u32 %v889, 7
          %v891 = vsub.s32 %v888, %v890
          %v892 = vrot.slane %v876, %v891
          %v894 = vunpack.c.l.s4 1966171168
          %v895 = vunpack.c.0.s8 %v894
          %v896 = vlaneseq
          %v897 = vshrl.u32 %v896, 7
          %v898 = vsub.s32 %v895, %v897
          %v899 = vrot.slane %v877, %v898
          %v901 = vunpack.c.l.s4 1966171168
          %v902 = vunpack.c.0.s8 %v901
          %v903 = vlaneseq
          %v904 = vshrl.u32 %v903, 7
          %v905 = vsub.s32 %v902, %v904
          %v906 = vrot.slane %v878, %v905
          %v907 = vcombine.high %v885, %v885
          %v908 = vcombine.high %v892, %v892
          %v909 = vcombine.high %v899, %v899
          %v910 = vcombine.high %v906, %v906
          %v911 = vlaneseq
          %v912 = vshrl.u32 %v911, 7
          %v913 = vsub.s32 0, %v912
          %v914 = vrot.slane %v722, %v913
          %916 = vbcast.lane.b32.xlu0 %v914, 256
          %v917 = vpop.permute.xlu0 %916
          %s919 = sor.u32 256, 8
          %920 = vbcast.lane.b32.xlu0 %v914, %s919
          %v921 = vpop.permute.xlu0 %920
          %v922 = vlaneseq
          %v923 = vshrl.u32 %v922, 7
          %v924 = vsub.s32 1, %v923
          %v925 = vrot.slane %v722, %v924
          %927 = vbcast.lane.b32.xlu0 %v925, 256
          %v928 = vpop.permute.xlu0 %927
          %s930 = sor.u32 256, 8
          %931 = vbcast.lane.b32.xlu0 %v925, %s930
          %v932 = vpop.permute.xlu0 %931
          %v933 = vlaneseq
          %v934 = vshrl.u32 %v933, 7
          %v935 = vsub.s32 2, %v934
          %v936 = vrot.slane %v722, %v935
          %938 = vbcast.lane.b32.xlu0 %v936, 256
          %v939 = vpop.permute.xlu0 %938
          %s941 = sor.u32 256, 8
          %942 = vbcast.lane.b32.xlu0 %v936, %s941
          %v943 = vpop.permute.xlu0 %942
          %v944 = vlaneseq
          %v945 = vshrl.u32 %v944, 7
          %v946 = vsub.s32 3, %v945
          %v947 = vrot.slane %v722, %v946
          %949 = vbcast.lane.b32.xlu0 %v947, 256
          %v950 = vpop.permute.xlu0 %949
          %s952 = sor.u32 256, 8
          %953 = vbcast.lane.b32.xlu0 %v947, %s952
          %v954 = vpop.permute.xlu0 %953
          %v955 = vlaneseq
          %v956 = vshrl.u32 %v955, 7
          %v957 = vsub.s32 4, %v956
          %v958 = vrot.slane %v722, %v957
          %960 = vbcast.lane.b32.xlu0 %v958, 256
          %v961 = vpop.permute.xlu0 %960
          %s963 = sor.u32 256, 8
          %964 = vbcast.lane.b32.xlu0 %v958, %s963
          %v965 = vpop.permute.xlu0 %964
          %v966 = vlaneseq
          %v967 = vshrl.u32 %v966, 7
          %v968 = vsub.s32 5, %v967
          %v969 = vrot.slane %v722, %v968
          %971 = vbcast.lane.b32.xlu0 %v969, 256
          %v972 = vpop.permute.xlu0 %971
          %s974 = sor.u32 256, 8
          %975 = vbcast.lane.b32.xlu0 %v969, %s974
          %v976 = vpop.permute.xlu0 %975
          %v977 = vlaneseq
          %v978 = vshrl.u32 %v977, 7
          %v979 = vsub.s32 6, %v978
          %v980 = vrot.slane %v722, %v979
          %982 = vbcast.lane.b32.xlu0 %v980, 256
          %v983 = vpop.permute.xlu0 %982
          %s985 = sor.u32 256, 8
          %986 = vbcast.lane.b32.xlu0 %v980, %s985
          %v987 = vpop.permute.xlu0 %986
          %v988 = vlaneseq
          %v989 = vshrl.u32 %v988, 7
          %v990 = vsub.s32 7, %v989
          %v991 = vrot.slane %v722, %v990
          %993 = vbcast.lane.b32.xlu0 %v991, 256
          %v994 = vpop.permute.xlu0 %993
          %s996 = sor.u32 256, 8
          %997 = vbcast.lane.b32.xlu0 %v991, %s996
          %v998 = vpop.permute.xlu0 %997
          %v999 = vlaneseq
          %v1000 = vshrl.u32 %v999, 7
          %v1001 = vsub.s32 0, %v1000
          %v1002 = vrot.slane %v885, %v1001
          %v1003 = vlaneseq
          %v1004 = vshrl.u32 %v1003, 7
          %v1005 = vsub.s32 0, %v1004
          %v1006 = vrot.slane %v899, %v1005
          %v1007 = vlaneseq
          %v1008 = vshrl.u32 %v1007, 7
          %v1009 = vsub.s32 0, %v1008
          %v1010 = vrot.slane %v907, %v1009
          %v1011 = vlaneseq
          %v1012 = vshrl.u32 %v1011, 7
          %v1013 = vsub.s32 0, %v1012
          %v1014 = vrot.slane %v909, %v1013
          %v1015 = vlaneseq
          %v1016 = vshrl.u32 %v1015, 7
          %v1017 = vsub.s32 0, %v1016
          %v1018 = vrot.slane %v892, %v1017
          %v1019 = vlaneseq
          %v1020 = vshrl.u32 %v1019, 7
          %v1021 = vsub.s32 0, %v1020
          %v1022 = vrot.slane %v906, %v1021
          %v1023 = vlaneseq
          %v1024 = vshrl.u32 %v1023, 7
          %v1025 = vsub.s32 0, %v1024
          %v1026 = vrot.slane %v908, %v1025
          %v1027 = vlaneseq
          %v1028 = vshrl.u32 %v1027, 7
          %v1029 = vsub.s32 0, %v1028
          %v1030 = vrot.slane %v910, %v1029
          %v1039 = vmul.f32 %v1002, %v917
          %v1040 = vmul.f32 %v1002, %v921
          %v1041 = vmul.f32 %v1006, %v928
          %v1042 = vmul.f32 %v1006, %v932
          %v1043 = vmul.f32 %v1010, %v939
          %v1044 = vmul.f32 %v1010, %v943
          %v1045 = vmul.f32 %v1014, %v950
          %v1046 = vmul.f32 %v1014, %v954
          %v1047 = vmul.f32 %v1018, %v961
          %v1048 = vmul.f32 %v1018, %v965
          %v1049 = vmul.f32 %v1022, %v972
          %v1050 = vmul.f32 %v1022, %v976
          %v1051 = vmul.f32 %v1026, %v983
          %v1052 = vmul.f32 %v1026, %v987
          %v1053 = vmul.f32 %v1030, %v994
          %v1054 = vmul.f32 %v1030, %v998
          %s1056 = sor.u32 256, 16
          %1057 = vbcast.lane.b32.xlu0 %v914, %s1056
          %v1058 = vpop.permute.xlu0 %1057
          %s1060 = sor.u32 256, 24
          %1061 = vbcast.lane.b32.xlu0 %v914, %s1060
          %v1062 = vpop.permute.xlu0 %1061
          %s1064 = sor.u32 256, 16
          %1065 = vbcast.lane.b32.xlu0 %v925, %s1064
          %v1066 = vpop.permute.xlu0 %1065
          %s1068 = sor.u32 256, 24
          %1069 = vbcast.lane.b32.xlu0 %v925, %s1068
          %v1070 = vpop.permute.xlu0 %1069
          %s1072 = sor.u32 256, 16
          %1073 = vbcast.lane.b32.xlu0 %v936, %s1072
          %v1074 = vpop.permute.xlu0 %1073
          %s1076 = sor.u32 256, 24
          %1077 = vbcast.lane.b32.xlu0 %v936, %s1076
          %v1078 = vpop.permute.xlu0 %1077
          %s1080 = sor.u32 256, 16
          %1081 = vbcast.lane.b32.xlu0 %v947, %s1080
          %v1082 = vpop.permute.xlu0 %1081
          %s1084 = sor.u32 256, 24
          %1085 = vbcast.lane.b32.xlu0 %v947, %s1084
          %v1086 = vpop.permute.xlu0 %1085
          %s1088 = sor.u32 256, 16
          %1089 = vbcast.lane.b32.xlu0 %v958, %s1088
          %v1090 = vpop.permute.xlu0 %1089
          %s1092 = sor.u32 256, 24
          %1093 = vbcast.lane.b32.xlu0 %v958, %s1092
          %v1094 = vpop.permute.xlu0 %1093
          %s1096 = sor.u32 256, 16
          %1097 = vbcast.lane.b32.xlu0 %v969, %s1096
          %v1098 = vpop.permute.xlu0 %1097
          %s1100 = sor.u32 256, 24
          %1101 = vbcast.lane.b32.xlu0 %v969, %s1100
          %v1102 = vpop.permute.xlu0 %1101
          %s1104 = sor.u32 256, 16
          %1105 = vbcast.lane.b32.xlu0 %v980, %s1104
          %v1106 = vpop.permute.xlu0 %1105
          %s1108 = sor.u32 256, 24
          %1109 = vbcast.lane.b32.xlu0 %v980, %s1108
          %v1110 = vpop.permute.xlu0 %1109
          %s1112 = sor.u32 256, 16
          %1113 = vbcast.lane.b32.xlu0 %v991, %s1112
          %v1114 = vpop.permute.xlu0 %1113
          %s1116 = sor.u32 256, 24
          %1117 = vbcast.lane.b32.xlu0 %v991, %s1116
          %v1118 = vpop.permute.xlu0 %1117
          %v1119 = vmul.f32 %v830, %v714
          %v1120 = vmul.f32 %v832, %v715
          %v1121 = vadd.f32 %v1119, %v1039
          %v1122 = vadd.f32 %v1120, %v1040
          %v1123 = vmul.f32 %v1121, %v1058
          %v1124 = vmul.f32 %v1122, %v1062
          %v1125 = vsel %vm587, %v1123, 0.0
          %v1126 = vsel %vm587, %v1124, 0.0
          %v1127 = vadd.f32 %v1125, %v1126
          %v1128 = vrot.slane %v1127, 4
          %v1129 = vadd.f32 %v1127, %v1128
          %v1130 = vrot.slane %v1129, 2
          %v1131 = vadd.f32 %v1129, %v1130
          %v1132 = vrot.slane %v1131, 1
          %v1133 = vadd.f32 %v1131, %v1132
          %s1134 = scalar_lea.vmem [#allocation7], %s716
          %vm1135 = vcmask 253952
          %1136 = vst.msk [vmem:[%s1134] sm:$0x1] %vm1135, %v1133
          %v1137 = vmul.f32 %v834, %v1121
          %v1138 = vmul.f32 %v836, %v1122
          %v1139 = vadd.f32 %v1137, %v1041
          %v1140 = vadd.f32 %v1138, %v1042
          %v1141 = vmul.f32 %v1139, %v1066
          %v1142 = vmul.f32 %v1140, %v1070
          %v1143 = vsel %vm587, %v1141, 0.0
          %v1144 = vsel %vm587, %v1142, 0.0
          %v1145 = vadd.f32 %v1143, %v1144
          %v1146 = vrot.slane %v1145, 4
          %v1147 = vadd.f32 %v1145, %v1146
          %v1148 = vrot.slane %v1147, 2
          %v1149 = vadd.f32 %v1147, %v1148
          %v1150 = vrot.slane %v1149, 1
          %v1151 = vadd.f32 %v1149, %v1150
          %s1152 = sadd.s32 %s716, 1
          %s1153 = scalar_lea.vmem [#allocation7], %s1152
          %1154 = vst.msk [vmem:[%s1153] sm:$0x1] %vm1135, %v1151
          %v1155 = vmul.f32 %v838, %v1139
          %v1156 = vmul.f32 %v840, %v1140
          %v1157 = vadd.f32 %v1155, %v1043
          %v1158 = vadd.f32 %v1156, %v1044
          %v1159 = vmul.f32 %v1157, %v1074
          %v1160 = vmul.f32 %v1158, %v1078
          %v1161 = vsel %vm587, %v1159, 0.0
          %v1162 = vsel %vm587, %v1160, 0.0
          %v1163 = vadd.f32 %v1161, %v1162
          %v1164 = vrot.slane %v1163, 4
          %v1165 = vadd.f32 %v1163, %v1164
          %v1166 = vrot.slane %v1165, 2
          %v1167 = vadd.f32 %v1165, %v1166
          %v1168 = vrot.slane %v1167, 1
          %v1169 = vadd.f32 %v1167, %v1168
          %s1170 = sadd.s32 %s716, 2
          %s1171 = scalar_lea.vmem [#allocation7], %s1170
          %1172 = vst.msk [vmem:[%s1171] sm:$0x1] %vm1135, %v1169
          %v1173 = vmul.f32 %v842, %v1157
          %v1174 = vmul.f32 %v844, %v1158
          %v1175 = vadd.f32 %v1173, %v1045
          %v1176 = vadd.f32 %v1174, %v1046
          %v1177 = vmul.f32 %v1175, %v1082
          %v1178 = vmul.f32 %v1176, %v1086
          %v1179 = vsel %vm587, %v1177, 0.0
          %v1180 = vsel %vm587, %v1178, 0.0
          %v1181 = vadd.f32 %v1179, %v1180
          %v1182 = vrot.slane %v1181, 4
          %v1183 = vadd.f32 %v1181, %v1182
          %v1184 = vrot.slane %v1183, 2
          %v1185 = vadd.f32 %v1183, %v1184
          %v1186 = vrot.slane %v1185, 1
          %v1187 = vadd.f32 %v1185, %v1186
          %s1188 = sadd.s32 %s716, 3
          %s1189 = scalar_lea.vmem [#allocation7], %s1188
          %1190 = vst.msk [vmem:[%s1189] sm:$0x1] %vm1135, %v1187
          %v1191 = vmul.f32 %v846, %v1175
          %v1192 = vmul.f32 %v848, %v1176
          %v1193 = vadd.f32 %v1191, %v1047
          %v1194 = vadd.f32 %v1192, %v1048
          %v1195 = vmul.f32 %v1193, %v1090
          %v1196 = vmul.f32 %v1194, %v1094
          %v1197 = vsel %vm587, %v1195, 0.0
          %v1198 = vsel %vm587, %v1196, 0.0
          %v1199 = vadd.f32 %v1197, %v1198
          %v1200 = vrot.slane %v1199, 4
          %v1201 = vadd.f32 %v1199, %v1200
          %v1202 = vrot.slane %v1201, 2
          %v1203 = vadd.f32 %v1201, %v1202
          %v1204 = vrot.slane %v1203, 1
          %v1205 = vadd.f32 %v1203, %v1204
          %s1206 = sadd.s32 %s716, 4
          %s1207 = scalar_lea.vmem [#allocation7], %s1206
          %1208 = vst.msk [vmem:[%s1207] sm:$0x1] %vm1135, %v1205
          %v1209 = vmul.f32 %v850, %v1193
          %v1210 = vmul.f32 %v852, %v1194
          %v1211 = vadd.f32 %v1209, %v1049
          %v1212 = vadd.f32 %v1210, %v1050
          %v1213 = vmul.f32 %v1211, %v1098
          %v1214 = vmul.f32 %v1212, %v1102
          %v1215 = vsel %vm587, %v1213, 0.0
          %v1216 = vsel %vm587, %v1214, 0.0
          %v1217 = vadd.f32 %v1215, %v1216
          %v1218 = vrot.slane %v1217, 4
          %v1219 = vadd.f32 %v1217, %v1218
          %v1220 = vrot.slane %v1219, 2
          %v1221 = vadd.f32 %v1219, %v1220
          %v1222 = vrot.slane %v1221, 1
          %v1223 = vadd.f32 %v1221, %v1222
          %s1224 = sadd.s32 %s716, 5
          %s1225 = scalar_lea.vmem [#allocation7], %s1224
          %1226 = vst.msk [vmem:[%s1225] sm:$0x1] %vm1135, %v1223
          %v1227 = vmul.f32 %v854, %v1211
          %v1228 = vmul.f32 %v856, %v1212
          %v1229 = vadd.f32 %v1227, %v1051
          %v1230 = vadd.f32 %v1228, %v1052
          %v1231 = vmul.f32 %v1229, %v1106
          %v1232 = vmul.f32 %v1230, %v1110
          %v1233 = vsel %vm587, %v1231, 0.0
          %v1234 = vsel %vm587, %v1232, 0.0
          %v1235 = vadd.f32 %v1233, %v1234
          %v1236 = vrot.slane %v1235, 4
          %v1237 = vadd.f32 %v1235, %v1236
          %v1238 = vrot.slane %v1237, 2
          %v1239 = vadd.f32 %v1237, %v1238
          %v1240 = vrot.slane %v1239, 1
          %v1241 = vadd.f32 %v1239, %v1240
          %s1242 = sadd.s32 %s716, 6
          %s1243 = scalar_lea.vmem [#allocation7], %s1242
          %1244 = vst.msk [vmem:[%s1243] sm:$0x1] %vm1135, %v1241
          %v1245 = vmul.f32 %v858, %v1229
          %v1246 = vmul.f32 %v860, %v1230
          %v1247 = vadd.f32 %v1245, %v1053
          %v1248 = vadd.f32 %v1246, %v1054
          %v1249 = vmul.f32 %v1247, %v1114
          %v1250 = vmul.f32 %v1248, %v1118
          %v1251 = vsel %vm587, %v1249, 0.0
          %v1252 = vsel %vm587, %v1250, 0.0
          %v1253 = vadd.f32 %v1251, %v1252
          %v1254 = vrot.slane %v1253, 4
          %v1255 = vadd.f32 %v1253, %v1254
          %v1256 = vrot.slane %v1255, 2
          %v1257 = vadd.f32 %v1255, %v1256
          %v1258 = vrot.slane %v1257, 1
          %v1259 = vadd.f32 %v1257, %v1258
          %s1260 = sadd.s32 %s716, 7
          %s1261 = scalar_lea.vmem [#allocation7], %s1260
          %1262 = vst.msk [vmem:[%s1261] sm:$0x1] %vm1135, %v1259
        $region85: #{tpu_custom_call.1} parent=55 // loop_footer
          %s713 = sadd.s32 1, %s709
        $region86: #{tpu_custom_call.1} parent=55 // loop_footer_branch
          %708 = sbr.rel target = $region82
        $region87: #{tpu_custom_call.1} parent=55 // loop_exit
          _
        %1263 = vst.msk [vmem:[#allocation2] sm:$0xff] %vm587, %v714
        %1264 = vst.msk [vmem:[#allocation2 + $0x8] sm:$0xff] %vm587, %v715
        %v1265 = vld [vmem:[#allocation7] sm:$0xff]
        %v1266 = vld [vmem:[#allocation7 + $0x8] sm:$0xff]
        %v1267 = vld [vmem:[%s8] sm:$0x1]
        %v1269 = vlaneseq
        %v1270 = vshrl.u32 %v1269, 7
        %v1271 = vsub.s32 0, %v1270
        %v1272 = vrot.slane %v1267, %v1271
        %v1274 = vmul.f32 %v566, %v1272
        %v1275 = vmul.f32 %v567, %v1272
        %v1276 = vadd.f32 %v1265, %v1274
        %v1277 = vadd.f32 %v1266, %v1275
        %v1278 = vld [vmem:[%s399] sm:$0xff]
        %v1279 = vld [vmem:[%s399 + $0x8] sm:$0xff]
        %v1280 = vxor.u32 %v1278, 2147483648
        %v1281 = vxor.u32 %v1279, 2147483648
        %v1282 = vmul.f32 %v1280, 1.442695
        %v1283 = vpow.pop %v1282
        %v1284 = vmul.f32 %v1281, 1.442695
        %v1285 = vpow.pop %v1284
        %v1286 = vadd.f32 %v1283, 1.0
        %v1287 = vadd.f32 %v1285, 1.0
        %v1288 = vrcp.pop %v1286
        %v1289 = vmul.f32 1.0, %v1288
        %v1290 = vrcp.pop %v1287
        %v1291 = vmul.f32 1.0, %v1290
        %v1292 = vmul.f32 %v1278, %v1289
        %v1293 = vmul.f32 %v1279, %v1291
        %v1294 = vmul.f32 %v1276, %v1292
        %v1295 = vmul.f32 %v1277, %v1293
        %1296 = vxpose.xlu0.b32.start [1/16] %v1294, 128
        %1297 = vxpose.xlu0.b32.cont [2/16] %v1295, 128
        %1298 = vxpose.xlu0.b32.cont [3/16] 0.0, 128
        %1299 = vxpose.xlu0.b32.cont [4/16] 0.0, 128
        %1300 = vxpose.xlu0.b32.cont [5/16] 0.0, 128
        %1301 = vxpose.xlu0.b32.cont [6/16] 0.0, 128
        %1302 = vxpose.xlu0.b32.cont [7/16] 0.0, 128
        %1303 = vxpose.xlu0.b32.cont [8/16] 0.0, 128
        %1304 = vxpose.xlu0.b32.cont [9/16] 0.0, 128
        %1305 = vxpose.xlu0.b32.cont [10/16] 0.0, 128
        %1306 = vxpose.xlu0.b32.cont [11/16] 0.0, 128
        %1307 = vxpose.xlu0.b32.cont [12/16] 0.0, 128
        %1308 = vxpose.xlu0.b32.cont [13/16] 0.0, 128
        %1309 = vxpose.xlu0.b32.cont [14/16] 0.0, 128
        %1310 = vxpose.xlu0.b32.cont [15/16] 0.0, 128
        %1311 = vxpose.xlu0.b32.end [16/16] 0.0, 128
        %v1312 = vpop.trf.xlu0
        %v1313 = vpop.trf.xlu0
        %v1314 = vpop.trf.xlu0
        %v1315 = vpop.trf.xlu0
        %v1316 = vpop.trf.xlu0
        %v1317 = vpop.trf.xlu0
        %v1318 = vpop.trf.xlu0
        %v1319 = vpop.trf.xlu0
        %v1320 = vpop.trf.xlu0
        %v1321 = vpop.trf.xlu0
        %v1322 = vpop.trf.xlu0
        %v1323 = vpop.trf.xlu0
        %v1324 = vpop.trf.xlu0
        %v1325 = vpop.trf.xlu0
        %v1326 = vpop.trf.xlu0
        %v1327 = vpop.trf.xlu0
        %vm1328 = vcmask 130048
        %1329 = vst.msk [vmem:[%s463] sm:$0xff] %vm1328, %v1312
        %1330 = vst.msk [vmem:[%s463 + $0x8] sm:$0xff] %vm1328, %v1313
        %1331 = vst.msk [vmem:[%s463 + $0x10] sm:$0xff] %vm1328, %v1314
        %1332 = vst.msk [vmem:[%s463 + $0x18] sm:$0xff] %vm1328, %v1315
        %p1333 = scmp.lt.s32.totalorder %s31, 1
        %s1334 = scalar_select %p1333, %s31, 1
        %p1335 = scmp.lt.s32.totalorder %s32, 0
        %s1336 = scalar_select %p1335, %s32, 0
        %s1337 = smul.addr %s1334, 4
        %s1338 = sadd.s32 %s1336, %s1337
        %s1339 = smul.addr %s1338, 8
        %s1340 = scalar_lea.vmem %s9, %s1339
        // Predicated region
        $region88: #{tpu_custom_call.1} parent=55 // pred_check
          %p1341 = pneg %p262
        $region89: #{tpu_custom_call.1} parent=55 // pred_check_branch
          %1343 = sbr.rel (%p1341) target = $region91
        $region90: #{tpu_custom_call.1} parent=55 // pred_region
          _
        $region91: #{tpu_custom_call.1} parent=55 // pred_fallthru
          _
      $region56: #{tpu_custom_call.1} parent=5 // pred_fallthru
        _
      %p1344 = scmp.le.s32.totalorder 2, %s22
      // Predicated region
      $region92: #{tpu_custom_call.1} parent=5 // pred_check
        %p1345 = pneg %p1344
      $region93: #{tpu_custom_call.1} parent=5 // pred_check_branch
        %1347 = sbr.rel (%p1345) target = $region95
      $region94: #{tpu_custom_call.1} parent=5 // pred_region
        %s1348 = ssub.s32 %s22, 2
        // Predicated region
        $region96: #{tpu_custom_call.1} parent=94 // pred_check
          %p1349 = pneg %p268
        $region97: #{tpu_custom_call.1} parent=94 // pred_check_branch
          %1351 = sbr.rel (%p1349) target = $region99
        $region98: #{tpu_custom_call.1} parent=94 // pred_region
          %p1352 = scmp.lt.s32.totalorder %s33, 1
          %s1353 = scalar_select %p1352, %s33, 1
          %p1354 = scmp.lt.s32.totalorder %s34, 0
          %s1355 = scalar_select %p1354, %s34, 0
          %s1356 = smul.addr %s1353, 4
          %s1357 = sadd.s32 %s1355, %s1356
          %s1358 = smul.addr %s1357, 8
          %s1359 = scalar_lea.vmem %s9, %s1358
        $region99: #{tpu_custom_call.1} parent=94 // pred_fallthru
          _
      $region95: #{tpu_custom_call.1} parent=5 // pred_fallthru
        _
    $region6: #{tpu_custom_call.1} parent=1 // loop_footer
      %s26 = sadd.s32 1, %s22
    $region7: #{tpu_custom_call.1} parent=1 // loop_footer_branch
      %21 = sbr.rel target = $region3
    $region8: #{tpu_custom_call.1} parent=1 // loop_exit
      _
    %1360 = vsyncpa [#allocation9], 1
    %s1361 = scalar_lea.sflag [#allocation9], 1
    %1362 = vsyncpa %s1361, 1
    %1363 = vsyncpa [#allocation11], 1
    %s1364 = scalar_lea.sflag [#allocation11], 1
    %1365 = vsyncpa %s1364, 1
    %1366 = vsyncpa [#allocation14], 1

</llo_original>
